<compile_context>
chip_gen: v7x
topology: tpu7x:2x2x1
jax: 0.10.0
libtpu: 0.0.40
codegen_flags: <defaults>
</compile_context>

<pallas_src>
import functools

import jax
import jax.numpy as jnp
from jax.experimental import pallas as pl
from jax.experimental.pallas import tpu as pltpu


# ------------------------------ fused kernel ----------------------------------
def _fused_lstm_kernel(ids_ref, emb_hbm, wih_ref, whh_ref, b_ref, wfc_ref, bfc_ref,
                       out_ref, act_scr, gx_scr, gsem, *, T, B, H):
    """One grid step == one LSTM layer.

    ids_ref : SMEM (T*B,) int32 time-major token ids (scalar prefetch).
    emb_hbm : HBM  (V, H) f32 embedding table (memory_space=pl.ANY).
    wih_ref : VMEM (H, 4H) bf16  this layer's W_ih^T (layer-streamed).
    whh_ref : VMEM (H, 4H) bf16  this layer's W_hh^T (layer-streamed).
    b_ref   : VMEM (1, 4H) f32   this layer's b_ih + b_hh.
    wfc_ref : VMEM (H, Op) bf16, bfc_ref (1, Op) f32  final FC (lane-padded).
    act_scr : VMEM (T*B, H) f32  inter-layer activations (persist across grid).
    gx_scr  : VMEM (T*B, 4H) f32 hoisted input->hidden gates of this layer.
    gsem    : DMA semaphores (2,) for the embedding-row gather ring.
    """
    TB = T * B
    layer = pl.program_id(0)
    n_layers = pl.num_programs(0)

    # ---- Layer 0 only: DMA-gather embedding rows from HBM into act_scr. -------
    @pl.when(layer == 0)
    def _():
        def issue(r):
            tok = ids_ref[r]
            pltpu.make_async_copy(
                emb_hbm.at[pl.ds(tok, 1), :],
                act_scr.at[pl.ds(r, 1), :],
                gsem.at[r & 1],
            ).start()

        issue(0)                                        # prime the 2-deep ring

        def gather_body(r, carry):
            @pl.when(r + 1 < TB)
            def _():
                issue(r + 1)                            # overlap next row's fetch
            pltpu.make_async_copy(                      # wait for row r
                emb_hbm.at[pl.ds(0, 1), :],
                act_scr.at[pl.ds(r, 1), :],
                gsem.at[r & 1],
            ).wait()
            return carry

        jax.lax.fori_loop(0, TB, gather_body, 0)
        # TODO(synk): coalesce duplicate tokens / deepen the DMA ring for long T.

    # ---- Hoisted input->hidden matmul for the whole sequence (one MXU op). ----
    gx_scr[...] = (
        jnp.dot(act_scr[...].astype(jnp.bfloat16), wih_ref[...],
                preferred_element_type=jnp.float32)
        + b_ref[...]
    )
    # TODO(synk): for long T, chunk this matmul over sequence tiles
    # (pltpu.emit_pipeline) so gx_scr stays O(chunk) instead of O(T).

    w_hh = whh_ref[...]                                 # (H, 4H) bf16, constant over T
    # TODO(synk): pin w_hh in the MXU across the recurrence via
    # pltpu.matmul_push_rhs / matmul_acc_lhs / matmul_pop.

    if H % 128 != 0:
        # Sub-128-lane gates: run sigmoid+tanh on the full lane-dense (B,4H) vreg
        # and lane-select the tanh (g) gate instead of 4 sub-vreg EUP calls.
        lane = jax.lax.broadcasted_iota(jnp.int32, (B, 4 * H), 1)
        g_lanes = (lane >= 2 * H) & (lane < 3 * H)

    def step(t, carry):
        h, c = carry
        row = pl.multiple_of(t * B, B)                  # B is sublane-aligned (>= 8)
        gx = gx_scr[pl.ds(row, B), :]                   # (B, 4H) timestep-t gates_x
        gates = gx + jnp.dot(h.astype(jnp.bfloat16), w_hh,
                             preferred_element_type=jnp.float32)
        if H % 128 == 0:
            # Gate slices are whole vregs: apply transcendentals per gate directly.
            i_g = jax.nn.sigmoid(gates[:, 0:H])
            f_g = jax.nn.sigmoid(gates[:, H:2 * H])
            g_g = jnp.tanh(gates[:, 2 * H:3 * H])
            o_g = jax.nn.sigmoid(gates[:, 3 * H:4 * H])
        else:
            sig = jax.nn.sigmoid(gates)
            th = jnp.tanh(gates)
            a = jnp.where(g_lanes, th, sig)             # PyTorch i|f|g|o gate order
            i_g = a[:, 0:H]
            f_g = a[:, H:2 * H]
            g_g = a[:, 2 * H:3 * H]
            o_g = a[:, 3 * H:4 * H]
        c_new = f_g * c + i_g * g_g
        h_new = o_g * jnp.tanh(c_new)
        # Next layer's input (dead-but-cheap store on the final layer).
        act_scr[pl.ds(row, B), :] = h_new
        return h_new, c_new

    h0 = jnp.zeros((B, H), jnp.float32)
    c0 = jnp.zeros((B, H), jnp.float32)
    h_last, _ = jax.lax.fori_loop(0, T, step, (h0, c0), unroll=min(T, 8))

    # ---- Last layer only: fused FC on the final hidden state. -----------------
    @pl.when(layer == n_layers - 1)
    def _():
        out_ref[...] = (
            jnp.dot(h_last.astype(jnp.bfloat16), wfc_ref[...],
                    preferred_element_type=jnp.float32)
            + bfc_ref[...]
        )
    # TODO(synk): on v7x, add a leading batch-parallel grid axis ("parallel") so the
    # second TensorCore runs the recurrence for half of the batch.


# --------------------------------- wrapper --------------------------------------
def _round_up(x, m):
    return -(-x // m) * m


def lstm_model_forward(params, x_idx):
    """x_idx: (B, T) int token ids -> (B, output_size) float32."""
    B, T = x_idx.shape
    V, H = params["embedding"].shape
    L = params["w_ih_all"].shape[0]
    O = params["fc_w_t"].shape[1]

    Bp = max(8, _round_up(B, 8))              # sublane-aligned batch
    Op = _round_up(O, 128)                    # lane-dense FC output

    # Pad batch with token 0 (sliced away below); time-major flat ids for SMEM.
    x_pad = jnp.pad(x_idx.astype(jnp.int32), ((0, Bp - B), (0, 0)))
    ids_tb = jnp.transpose(x_pad, (1, 0)).reshape(T * Bp)

    # bf16 weights, f32 accumulation in-kernel; biases / embedding stay f32.
    w_ih = params["w_ih_all"].astype(jnp.bfloat16)
    w_hh = params["w_hh_all"].astype(jnp.bfloat16)
    bias = params["bias_all"]
    fc_w = jnp.pad(params["fc_w_t"], ((0, 0), (0, Op - O))).astype(jnp.bfloat16)
    fc_b = jnp.pad(params["fc_b"], ((0, 0), (0, Op - O)))

    kernel = functools.partial(_fused_lstm_kernel, T=T, B=Bp, H=H)

    # Scoped-VMEM budget from the actual footprint (scratch + double-buffered
    # per-layer weights + FC + IO), with headroom; capped at v7x's 64 MiB.
    f32b, bf16b = 4, 2
    footprint = (
        T * Bp * H * f32b + T * Bp * 4 * H * f32b                 # act_scr + gx_scr
        + 2 * (2 * H * 4 * H * bf16b + 4 * H * f32b)              # W_ih/W_hh/bias x2 bufs
        + H * Op * bf16b + Op * f32b                              # FC weights
        + 2 * Bp * Op * f32b                                      # output
    )
    vmem_bytes = min(64 * 1024 * 1024, max(16 * 1024 * 1024, int(1.5 * footprint)))

    out = pl.pallas_call(
        kernel,
        out_shape=jax.ShapeDtypeStruct((Bp, Op), jnp.float32),
        grid_spec=pltpu.PrefetchScalarGridSpec(
            num_scalar_prefetch=1,                                # ids -> SMEM
            grid=(L,),                                            # stream weights per layer
            in_specs=[
                pl.BlockSpec(memory_space=pl.ANY),                # embedding table (HBM)
                pl.BlockSpec((None, H, 4 * H), lambda l, ids: (l, 0, 0)),   # W_ih^T
                pl.BlockSpec((None, H, 4 * H), lambda l, ids: (l, 0, 0)),   # W_hh^T
                pl.BlockSpec((None, 1, 4 * H), lambda l, ids: (l, 0, 0)),   # bias
                pl.BlockSpec((H, Op), lambda l, ids: (0, 0)),               # FC weight^T
                pl.BlockSpec((1, Op), lambda l, ids: (0, 0)),               # FC bias
            ],
            out_specs=pl.BlockSpec((Bp, Op), lambda l, ids: (0, 0)),
            scratch_shapes=[
                pltpu.VMEM((T * Bp, H), jnp.float32),             # inter-layer activations
                pltpu.VMEM((T * Bp, 4 * H), jnp.float32),         # hoisted gates_x
                pltpu.SemaphoreType.DMA((2,)),                    # embedding gather ring
            ],
        ),
        compiler_params=pltpu.CompilerParams(
            dimension_semantics=("arbitrary",),                   # layers are sequential
            vmem_limit_bytes=vmem_bytes,
        ),
    )(ids_tb, params["embedding"], w_ih, w_hh, bias, fc_w, fc_b)

    return out[:B, :O]


# --------------------------------- params --------------------------------------
def init_params(key, input_size, hidden_size, num_layers, output_size):
    H = hidden_size
    k = 1.0 / jnp.sqrt(jnp.float32(H))
    key, sub = jax.random.split(key)
    embedding = jax.random.normal(sub, (input_size, H), jnp.float32)

    w_ih_t, w_hh_t, bias = [], [], []
    for _ in range(num_layers):
        key, k1, k2, k3, k4 = jax.random.split(key, 5)
        w_ih = jax.random.uniform(k1, (4 * H, H), jnp.float32, -k, k)
        w_hh = jax.random.uniform(k2, (4 * H, H), jnp.float32, -k, k)
        b_ih = jax.random.uniform(k3, (4 * H,), jnp.float32, -k, k)
        b_hh = jax.random.uniform(k4, (4 * H,), jnp.float32, -k, k)
        w_ih_t.append(w_ih.T)                                    # (H, 4H)
        w_hh_t.append(w_hh.T)                                    # (H, 4H)
        bias.append((b_ih + b_hh).reshape(1, 4 * H))

    key, k1, k2 = jax.random.split(key, 3)
    w_fc = jax.random.uniform(k1, (output_size, H), jnp.float32, -k, k)
    b_fc = jax.random.uniform(k2, (output_size,), jnp.float32, -k, k)

    return {
        "embedding": embedding,                                  # (V, H)
        "w_ih_all": jnp.stack(w_ih_t),                           # (L, H, 4H)
        "w_hh_all": jnp.stack(w_hh_t),                           # (L, H, 4H)
        "bias_all": jnp.stack(bias),                             # (L, 1, 4H)
        "fc_w_t": w_fc.T,                                        # (H, O)
        "fc_b": b_fc.reshape(1, output_size),                    # (1, O)
    }


# --------------------------- pure-JAX reference ---------------------------------
def _reference_forward(params, x_idx):
    emb = jnp.take(params["embedding"], x_idx, axis=0)           # (B, T, H)
    B, T, H = emb.shape
    L = params["w_ih_all"].shape[0]
    act = emb
    for l in range(L):
        w_ih_t = params["w_ih_all"][l]
        w_hh_t = params["w_hh_all"][l]
        b = params["bias_all"][l]
        h = jnp.zeros((B, H), jnp.float32)
        c = jnp.zeros((B, H), jnp.float32)
        outs = []
        for t in range(T):
            gates = act[:, t, :] @ w_ih_t + h @ w_hh_t + b
            i = jax.nn.sigmoid(gates[:, 0:H])
            f = jax.nn.sigmoid(gates[:, H:2 * H])
            g = jnp.tanh(gates[:, 2 * H:3 * H])
            o = jax.nn.sigmoid(gates[:, 3 * H:4 * H])
            c = f * c + i * g
            h = o * jnp.tanh(c)
            outs.append(h)
        act = jnp.stack(outs, axis=1)
    return act[:, -1, :] @ params["fc_w_t"] + params["fc_b"]


# ----------------------------------- main ----------------------------------------
if __name__ == "__main__":
    input_size = 16     # vocab size
    hidden_size = 32
    num_layers = 2
    output_size = 8
    batch = 2
    seq_len = 8

    key = jax.random.PRNGKey(0)
    key, pkey, xkey = jax.random.split(key, 3)
    params = init_params(pkey, input_size, hidden_size, num_layers, output_size)
    x = jax.random.randint(xkey, (batch, seq_len), 0, input_size, dtype=jnp.int32)

    fwd = jax.jit(lstm_model_forward)
    out = fwd(params, x)
    jax.block_until_ready(out)
    assert out.shape == (batch, output_size)

    ref = _reference_forward(params, x)
    # bf16 weights (f32 accumulation) vs. the all-f32 reference -> loose tolerance.
    assert jnp.allclose(out, ref, atol=2e-2, rtol=2e-2), (out, ref)

    print("KERNEL_OK")
</pallas_src>

<mosaic_0001>
module attributes {stable_mosaic.version = 11 : i64} {
  func.func @_fused_lstm_kernel(%arg0: i32, %arg1: memref<64xi32, #tpu.memory_space<smem>>, %arg2: memref<16x32xf32, #tpu.memory_space<any>>, %arg3: memref<1x32x128xbf16, #tpu.memory_space<vmem>>, %arg4: memref<1x32x128xbf16, #tpu.memory_space<vmem>>, %arg5: memref<1x1x128xf32, #tpu.memory_space<vmem>>, %arg6: memref<32x128xbf16, #tpu.memory_space<vmem>>, %arg7: memref<1x128xf32, #tpu.memory_space<vmem>>, %arg8: memref<8x128xf32, #tpu.memory_space<vmem>>, %arg9: memref<64x32xf32, #tpu.memory_space<vmem>>, %arg10: memref<64x128xf32, #tpu.memory_space<vmem>>, %arg11: memref<2x!tpu.dma_semaphore, #tpu.memory_space<semaphore_mem>>) attributes {dimension_semantics = [#tpu.dimension_semantics<arbitrary>], iteration_bounds = array<i64: 2>, scalar_prefetch = 1 : i64, scratch_operands = 3 : i64, tpu.core_type = #tpu.core_type<tc>, window_params = [{}, {transform_indices = @transform_1, window_bounds = array<i64: 1, 32, 128>}, {transform_indices = @transform_2, window_bounds = array<i64: 1, 32, 128>}, {transform_indices = @transform_3, window_bounds = array<i64: 1, 1, 128>}, {pipeline_mode = #tpu.pipeline_mode<synchronous>, transform_indices = @transform_4, window_bounds = array<i64: 32, 128>}, {pipeline_mode = #tpu.pipeline_mode<synchronous>, transform_indices = @transform_5, window_bounds = array<i64: 1, 128>}, {pipeline_mode = #tpu.pipeline_mode<synchronous>, transform_indices = @transform_6, window_bounds = array<i64: 8, 128>}]} {
    %c0_i32 = arith.constant 0 : i32
    %0 = arith.cmpi eq, %arg0, %c0_i32 : i32
    %1 = arith.extui %0 : i1 to i32
    %c0_i32_0 = arith.constant 0 : i32
    %2 = arith.cmpi ne, %1, %c0_i32_0 : i32
    scf.if %2 {
      %c0_58 = arith.constant 0 : index
      %226 = memref.load %arg1[%c0_58] : memref<64xi32, #tpu.memory_space<smem>>
      %c0_i32_59 = arith.constant 0 : i32
      %c0_i32_60 = arith.constant 0 : i32
      %227 = tpu.memref_slice %arg2[%226, %c0_i32_60] : memref<16x32xf32, #tpu.memory_space<any>> -> memref<1x32xf32, #tpu.memory_space<any>>
      %c0_i32_61 = arith.constant 0 : i32
      %c0_i32_62 = arith.constant 0 : i32
      %228 = tpu.memref_slice %arg9[%c0_i32_61, %c0_i32_62] : memref<64x32xf32, #tpu.memory_space<vmem>> -> memref<1x32xf32, #tpu.memory_space<vmem>>
      %229 = tpu.memref_slice %arg11[%c0_i32_59] : memref<2x!tpu.dma_semaphore, #tpu.memory_space<semaphore_mem>> -> memref<1x!tpu.dma_semaphore, #tpu.memory_space<semaphore_mem>>
      %230 = tpu.memref_squeeze %229 : memref<1x!tpu.dma_semaphore, #tpu.memory_space<semaphore_mem>> -> memref<!tpu.dma_semaphore, #tpu.memory_space<semaphore_mem>>
      tpu.enqueue_dma source(%227 : memref<1x32xf32, #tpu.memory_space<any>>) target(%228 : memref<1x32xf32, #tpu.memory_space<vmem>>) target_semaphore(%230 : memref<!tpu.dma_semaphore, #tpu.memory_space<semaphore_mem>>)
      %c0_i32_63 = arith.constant 0 : i32
      %c64_i32_64 = arith.constant 64 : i32
      %231 = arith.addi %c0_i32_63, %c64_i32_64 : i32
      %c1_i32_65 = arith.constant 1 : i32
      scf.for %arg12 = %c0_i32_63 to %231 step %c1_i32_65  : i32 {
        %c1_i32_67 = arith.constant 1 : i32
        %232 = arith.addi %arg12, %c1_i32_67 : i32
        %c64_i32_68 = arith.constant 64 : i32
        %233 = arith.cmpi slt, %232, %c64_i32_68 : i32
        %234 = arith.extui %233 : i1 to i32
        %c0_i32_69 = arith.constant 0 : i32
        %235 = arith.cmpi ne, %234, %c0_i32_69 : i32
        scf.if %235 {
          %c1_i32_74 = arith.constant 1 : i32
          %241 = arith.addi %arg12, %c1_i32_74 : i32
          %242 = arith.index_cast %241 : i32 to index
          %243 = memref.load %arg1[%242] : memref<64xi32, #tpu.memory_space<smem>>
          %c1_i32_75 = arith.constant 1 : i32
          %244 = arith.andi %241, %c1_i32_75 : i32
          %c0_i32_76 = arith.constant 0 : i32
          %245 = tpu.memref_slice %arg2[%243, %c0_i32_76] : memref<16x32xf32, #tpu.memory_space<any>> -> memref<1x32xf32, #tpu.memory_space<any>>
          %c0_i32_77 = arith.constant 0 : i32
          %246 = tpu.memref_slice %arg9[%241, %c0_i32_77] : memref<64x32xf32, #tpu.memory_space<vmem>> -> memref<1x32xf32, #tpu.memory_space<vmem>>
          %247 = tpu.memref_slice %arg11[%244] : memref<2x!tpu.dma_semaphore, #tpu.memory_space<semaphore_mem>> -> memref<1x!tpu.dma_semaphore, #tpu.memory_space<semaphore_mem>>
          %248 = tpu.memref_squeeze %247 : memref<1x!tpu.dma_semaphore, #tpu.memory_space<semaphore_mem>> -> memref<!tpu.dma_semaphore, #tpu.memory_space<semaphore_mem>>
          tpu.enqueue_dma source(%245 : memref<1x32xf32, #tpu.memory_space<any>>) target(%246 : memref<1x32xf32, #tpu.memory_space<vmem>>) target_semaphore(%248 : memref<!tpu.dma_semaphore, #tpu.memory_space<semaphore_mem>>)
        } else {
        }
        %c1_i32_70 = arith.constant 1 : i32
        %236 = arith.andi %arg12, %c1_i32_70 : i32
        %c0_i32_71 = arith.constant 0 : i32
        %c0_i32_72 = arith.constant 0 : i32
        %237 = tpu.memref_slice %arg2[%c0_i32_71, %c0_i32_72] : memref<16x32xf32, #tpu.memory_space<any>> -> memref<1x32xf32, #tpu.memory_space<any>>
        %c0_i32_73 = arith.constant 0 : i32
        %238 = tpu.memref_slice %arg9[%arg12, %c0_i32_73] : memref<64x32xf32, #tpu.memory_space<vmem>> -> memref<1x32xf32, #tpu.memory_space<vmem>>
        %239 = tpu.memref_slice %arg11[%236] : memref<2x!tpu.dma_semaphore, #tpu.memory_space<semaphore_mem>> -> memref<1x!tpu.dma_semaphore, #tpu.memory_space<semaphore_mem>>
        %240 = tpu.memref_squeeze %239 : memref<1x!tpu.dma_semaphore, #tpu.memory_space<semaphore_mem>> -> memref<!tpu.dma_semaphore, #tpu.memory_space<semaphore_mem>>
        tpu.wait_dma2 semaphore(%240 : memref<!tpu.dma_semaphore, #tpu.memory_space<semaphore_mem>>) src(%237 : memref<1x32xf32, #tpu.memory_space<any>>) dst(%238 : memref<1x32xf32, #tpu.memory_space<vmem>>)
      }
      %c64_i32_66 = arith.constant 64 : i32
    } else {
    }
    %c0 = arith.constant 0 : index
    %c0_1 = arith.constant 0 : index
    %3 = vector.load %arg9[%c0, %c0_1] : memref<64x32xf32, #tpu.memory_space<vmem>>, vector<64x32xf32>
    %4 = arith.truncf %3 : vector<64x32xf32> to vector<64x32xbf16>
    %c0_2 = arith.constant 0 : index
    %c0_3 = arith.constant 0 : index
    %c0_4 = arith.constant 0 : index
    %5 = vector.load %arg3[%c0_2, %c0_3, %c0_4] : memref<1x32x128xbf16, #tpu.memory_space<vmem>>, vector<1x32x128xbf16>
    %6 = vector.shape_cast %5 : vector<1x32x128xbf16> to vector<32x128xbf16>
    %cst = arith.constant dense<0.000000e+00> : vector<64x128xf32>
    %7 = tpu.matmul %4, %6, %cst {dimension_numbers = #tpu.dot_dimension_numbers<[1], [0], [0], [1], [0, 0, 1, 1], [], []>} : vector<64x32xbf16>, vector<32x128xbf16>, vector<64x128xf32> -> vector<64x128xf32>
    %c0_5 = arith.constant 0 : index
    %c0_6 = arith.constant 0 : index
    %c0_7 = arith.constant 0 : index
    %8 = vector.load %arg5[%c0_5, %c0_6, %c0_7] : memref<1x1x128xf32, #tpu.memory_space<vmem>>, vector<1x1x128xf32>
    %9 = vector.shape_cast %8 : vector<1x1x128xf32> to vector<1x128xf32>
    %10 = vector.broadcast %9 : vector<1x128xf32> to vector<64x128xf32>
    %11 = arith.addf %7, %10 : vector<64x128xf32>
    %c0_8 = arith.constant 0 : index
    %c0_9 = arith.constant 0 : index
    %12 = vector.load %arg10[%c0_8, %c0_9] : memref<64x128xf32, #tpu.memory_space<vmem>>, vector<64x128xf32>
    tpu.vector_store %arg10[%c0_8, %c0_9], %11 {strides = array<i32>} : memref<64x128xf32, #tpu.memory_space<vmem>>, vector<64x128xf32>,
    %c0_10 = arith.constant 0 : index
    %c0_11 = arith.constant 0 : index
    %c0_12 = arith.constant 0 : index
    %13 = vector.load %arg4[%c0_10, %c0_11, %c0_12] : memref<1x32x128xbf16, #tpu.memory_space<vmem>>, vector<1x32x128xbf16>
    %14 = vector.shape_cast %13 : vector<1x32x128xbf16> to vector<32x128xbf16>
    %15 = tpu.iota {dimensions = array<i32: 1>} : vector<8x128xi32>
    %c64_i32 = arith.constant 64 : i32
    %16 = vector.broadcast %c64_i32 : i32 to vector<8x128xi32>
    %17 = arith.cmpi sge, %15, %16 : vector<8x128xi32>
    %c96_i32 = arith.constant 96 : i32
    %18 = vector.broadcast %c96_i32 : i32 to vector<8x128xi32>
    %19 = arith.cmpi slt, %15, %18 : vector<8x128xi32>
    %20 = arith.andi %17, %19 : vector<8x128xi1>
    %cst_13 = arith.constant 0.000000e+00 : f32
    %21 = vector.broadcast %cst_13 : f32 to vector<8x32xf32>
    %cst_14 = arith.constant 0.000000e+00 : f32
    %22 = vector.broadcast %cst_14 : f32 to vector<8x32xf32>
    %c0_i32_15 = arith.constant 0 : i32
    %c8_i32 = arith.constant 8 : i32
    %23 = arith.muli %c0_i32_15, %c8_i32 : i32
    %24 = tpu.assume_multiple %23, 8 : i32
    %25 = arith.index_cast %24 : i32 to index
    %c0_16 = arith.constant 0 : index
    %26 = vector.load %arg10[%25, %c0_16] : memref<64x128xf32, #tpu.memory_space<vmem>>, vector<8x128xf32>
    %27 = arith.truncf %21 : vector<8x32xf32> to vector<8x32xbf16>
    %cst_17 = arith.constant dense<0.000000e+00> : vector<8x128xf32>
    %28 = tpu.matmul %27, %14, %cst_17 {dimension_numbers = #tpu.dot_dimension_numbers<[1], [0], [0], [1], [0, 0, 1, 1], [], []>} : vector<8x32xbf16>, vector<32x128xbf16>, vector<8x128xf32> -> vector<8x128xf32>
    %29 = arith.addf %26, %28 : vector<8x128xf32>
    %30 = arith.negf %29 : vector<8x128xf32>
    %31 = math.exp %30 : vector<8x128xf32>
    %cst_18 = arith.constant 1.000000e+00 : f32
    %32 = vector.broadcast %cst_18 : f32 to vector<8x128xf32>
    %33 = arith.addf %32, %31 : vector<8x128xf32>
    %34 = arith.divf %32, %33 : vector<8x128xf32>
    %35 = math.tanh %29 : vector<8x128xf32>
    %36 = arith.select %20, %35, %34 : vector<8x128xi1>, vector<8x128xf32>
    %37 = vector.extract_strided_slice %36 {offsets = [0, 0], sizes = [8, 32], strides = [1, 1]} : vector<8x128xf32> to vector<8x32xf32>
    %38 = vector.extract_strided_slice %36 {offsets = [0, 32], sizes = [8, 32], strides = [1, 1]} : vector<8x128xf32> to vector<8x32xf32>
    %39 = vector.extract_strided_slice %36 {offsets = [0, 64], sizes = [8, 32], strides = [1, 1]} : vector<8x128xf32> to vector<8x32xf32>
    %40 = vector.extract_strided_slice %36 {offsets = [0, 96], sizes = [8, 32], strides = [1, 1]} : vector<8x128xf32> to vector<8x32xf32>
    %41 = arith.mulf %38, %22 : vector<8x32xf32>
    %42 = arith.mulf %37, %39 : vector<8x32xf32>
    %43 = arith.addf %41, %42 : vector<8x32xf32>
    %44 = math.tanh %43 : vector<8x32xf32>
    %45 = arith.mulf %40, %44 : vector<8x32xf32>
    %46 = arith.index_cast %24 : i32 to index
    %c0_19 = arith.constant 0 : index
    %47 = vector.load %arg9[%46, %c0_19] : memref<64x32xf32, #tpu.memory_space<vmem>>, vector<8x32xf32>
    tpu.vector_store %arg9[%46, %c0_19], %45 {strides = array<i32>} : memref<64x32xf32, #tpu.memory_space<vmem>>, vector<8x32xf32>,
    %c1_i32 = arith.constant 1 : i32
    %c8_i32_20 = arith.constant 8 : i32
    %48 = arith.muli %c1_i32, %c8_i32_20 : i32
    %49 = tpu.assume_multiple %48, 8 : i32
    %50 = arith.index_cast %49 : i32 to index
    %c0_21 = arith.constant 0 : index
    %51 = vector.load %arg10[%50, %c0_21] : memref<64x128xf32, #tpu.memory_space<vmem>>, vector<8x128xf32>
    %52 = arith.truncf %45 : vector<8x32xf32> to vector<8x32xbf16>
    %cst_22 = arith.constant dense<0.000000e+00> : vector<8x128xf32>
    %53 = tpu.matmul %52, %14, %cst_22 {dimension_numbers = #tpu.dot_dimension_numbers<[1], [0], [0], [1], [0, 0, 1, 1], [], []>} : vector<8x32xbf16>, vector<32x128xbf16>, vector<8x128xf32> -> vector<8x128xf32>
    %54 = arith.addf %51, %53 : vector<8x128xf32>
    %55 = arith.negf %54 : vector<8x128xf32>
    %56 = math.exp %55 : vector<8x128xf32>
    %cst_23 = arith.constant 1.000000e+00 : f32
    %57 = vector.broadcast %cst_23 : f32 to vector<8x128xf32>
    %58 = arith.addf %57, %56 : vector<8x128xf32>
    %59 = arith.divf %57, %58 : vector<8x128xf32>
    %60 = math.tanh %54 : vector<8x128xf32>
    %61 = arith.select %20, %60, %59 : vector<8x128xi1>, vector<8x128xf32>
    %62 = vector.extract_strided_slice %61 {offsets = [0, 0], sizes = [8, 32], strides = [1, 1]} : vector<8x128xf32> to vector<8x32xf32>
    %63 = vector.extract_strided_slice %61 {offsets = [0, 32], sizes = [8, 32], strides = [1, 1]} : vector<8x128xf32> to vector<8x32xf32>
    %64 = vector.extract_strided_slice %61 {offsets = [0, 64], sizes = [8, 32], strides = [1, 1]} : vector<8x128xf32> to vector<8x32xf32>
    %65 = vector.extract_strided_slice %61 {offsets = [0, 96], sizes = [8, 32], strides = [1, 1]} : vector<8x128xf32> to vector<8x32xf32>
    %66 = arith.mulf %63, %43 : vector<8x32xf32>
    %67 = arith.mulf %62, %64 : vector<8x32xf32>
    %68 = arith.addf %66, %67 : vector<8x32xf32>
    %69 = math.tanh %68 : vector<8x32xf32>
    %70 = arith.mulf %65, %69 : vector<8x32xf32>
    %71 = arith.index_cast %49 : i32 to index
    %c0_24 = arith.constant 0 : index
    %72 = vector.load %arg9[%71, %c0_24] : memref<64x32xf32, #tpu.memory_space<vmem>>, vector<8x32xf32>
    tpu.vector_store %arg9[%71, %c0_24], %70 {strides = array<i32>} : memref<64x32xf32, #tpu.memory_space<vmem>>, vector<8x32xf32>,
    %c2_i32 = arith.constant 2 : i32
    %c8_i32_25 = arith.constant 8 : i32
    %73 = arith.muli %c2_i32, %c8_i32_25 : i32
    %74 = tpu.assume_multiple %73, 8 : i32
    %75 = arith.index_cast %74 : i32 to index
    %c0_26 = arith.constant 0 : index
    %76 = vector.load %arg10[%75, %c0_26] : memref<64x128xf32, #tpu.memory_space<vmem>>, vector<8x128xf32>
    %77 = arith.truncf %70 : vector<8x32xf32> to vector<8x32xbf16>
    %cst_27 = arith.constant dense<0.000000e+00> : vector<8x128xf32>
    %78 = tpu.matmul %77, %14, %cst_27 {dimension_numbers = #tpu.dot_dimension_numbers<[1], [0], [0], [1], [0, 0, 1, 1], [], []>} : vector<8x32xbf16>, vector<32x128xbf16>, vector<8x128xf32> -> vector<8x128xf32>
    %79 = arith.addf %76, %78 : vector<8x128xf32>
    %80 = arith.negf %79 : vector<8x128xf32>
    %81 = math.exp %80 : vector<8x128xf32>
    %cst_28 = arith.constant 1.000000e+00 : f32
    %82 = vector.broadcast %cst_28 : f32 to vector<8x128xf32>
    %83 = arith.addf %82, %81 : vector<8x128xf32>
    %84 = arith.divf %82, %83 : vector<8x128xf32>
    %85 = math.tanh %79 : vector<8x128xf32>
    %86 = arith.select %20, %85, %84 : vector<8x128xi1>, vector<8x128xf32>
    %87 = vector.extract_strided_slice %86 {offsets = [0, 0], sizes = [8, 32], strides = [1, 1]} : vector<8x128xf32> to vector<8x32xf32>
    %88 = vector.extract_strided_slice %86 {offsets = [0, 32], sizes = [8, 32], strides = [1, 1]} : vector<8x128xf32> to vector<8x32xf32>
    %89 = vector.extract_strided_slice %86 {offsets = [0, 64], sizes = [8, 32], strides = [1, 1]} : vector<8x128xf32> to vector<8x32xf32>
    %90 = vector.extract_strided_slice %86 {offsets = [0, 96], sizes = [8, 32], strides = [1, 1]} : vector<8x128xf32> to vector<8x32xf32>
    %91 = arith.mulf %88, %68 : vector<8x32xf32>
    %92 = arith.mulf %87, %89 : vector<8x32xf32>
    %93 = arith.addf %91, %92 : vector<8x32xf32>
    %94 = math.tanh %93 : vector<8x32xf32>
    %95 = arith.mulf %90, %94 : vector<8x32xf32>
    %96 = arith.index_cast %74 : i32 to index
    %c0_29 = arith.constant 0 : index
    %97 = vector.load %arg9[%96, %c0_29] : memref<64x32xf32, #tpu.memory_space<vmem>>, vector<8x32xf32>
    tpu.vector_store %arg9[%96, %c0_29], %95 {strides = array<i32>} : memref<64x32xf32, #tpu.memory_space<vmem>>, vector<8x32xf32>,
    %c3_i32 = arith.constant 3 : i32
    %c8_i32_30 = arith.constant 8 : i32
    %98 = arith.muli %c3_i32, %c8_i32_30 : i32
    %99 = tpu.assume_multiple %98, 8 : i32
    %100 = arith.index_cast %99 : i32 to index
    %c0_31 = arith.constant 0 : index
    %101 = vector.load %arg10[%100, %c0_31] : memref<64x128xf32, #tpu.memory_space<vmem>>, vector<8x128xf32>
    %102 = arith.truncf %95 : vector<8x32xf32> to vector<8x32xbf16>
    %cst_32 = arith.constant dense<0.000000e+00> : vector<8x128xf32>
    %103 = tpu.matmul %102, %14, %cst_32 {dimension_numbers = #tpu.dot_dimension_numbers<[1], [0], [0], [1], [0, 0, 1, 1], [], []>} : vector<8x32xbf16>, vector<32x128xbf16>, vector<8x128xf32> -> vector<8x128xf32>
    %104 = arith.addf %101, %103 : vector<8x128xf32>
    %105 = arith.negf %104 : vector<8x128xf32>
    %106 = math.exp %105 : vector<8x128xf32>
    %cst_33 = arith.constant 1.000000e+00 : f32
    %107 = vector.broadcast %cst_33 : f32 to vector<8x128xf32>
    %108 = arith.addf %107, %106 : vector<8x128xf32>
    %109 = arith.divf %107, %108 : vector<8x128xf32>
    %110 = math.tanh %104 : vector<8x128xf32>
    %111 = arith.select %20, %110, %109 : vector<8x128xi1>, vector<8x128xf32>
    %112 = vector.extract_strided_slice %111 {offsets = [0, 0], sizes = [8, 32], strides = [1, 1]} : vector<8x128xf32> to vector<8x32xf32>
    %113 = vector.extract_strided_slice %111 {offsets = [0, 32], sizes = [8, 32], strides = [1, 1]} : vector<8x128xf32> to vector<8x32xf32>
    %114 = vector.extract_strided_slice %111 {offsets = [0, 64], sizes = [8, 32], strides = [1, 1]} : vector<8x128xf32> to vector<8x32xf32>
    %115 = vector.extract_strided_slice %111 {offsets = [0, 96], sizes = [8, 32], strides = [1, 1]} : vector<8x128xf32> to vector<8x32xf32>
    %116 = arith.mulf %113, %93 : vector<8x32xf32>
    %117 = arith.mulf %112, %114 : vector<8x32xf32>
    %118 = arith.addf %116, %117 : vector<8x32xf32>
    %119 = math.tanh %118 : vector<8x32xf32>
    %120 = arith.mulf %115, %119 : vector<8x32xf32>
    %121 = arith.index_cast %99 : i32 to index
    %c0_34 = arith.constant 0 : index
    %122 = vector.load %arg9[%121, %c0_34] : memref<64x32xf32, #tpu.memory_space<vmem>>, vector<8x32xf32>
    tpu.vector_store %arg9[%121, %c0_34], %120 {strides = array<i32>} : memref<64x32xf32, #tpu.memory_space<vmem>>, vector<8x32xf32>,
    %c4_i32 = arith.constant 4 : i32
    %c8_i32_35 = arith.constant 8 : i32
    %123 = arith.muli %c4_i32, %c8_i32_35 : i32
    %124 = tpu.assume_multiple %123, 8 : i32
    %125 = arith.index_cast %124 : i32 to index
    %c0_36 = arith.constant 0 : index
    %126 = vector.load %arg10[%125, %c0_36] : memref<64x128xf32, #tpu.memory_space<vmem>>, vector<8x128xf32>
    %127 = arith.truncf %120 : vector<8x32xf32> to vector<8x32xbf16>
    %cst_37 = arith.constant dense<0.000000e+00> : vector<8x128xf32>
    %128 = tpu.matmul %127, %14, %cst_37 {dimension_numbers = #tpu.dot_dimension_numbers<[1], [0], [0], [1], [0, 0, 1, 1], [], []>} : vector<8x32xbf16>, vector<32x128xbf16>, vector<8x128xf32> -> vector<8x128xf32>
    %129 = arith.addf %126, %128 : vector<8x128xf32>
    %130 = arith.negf %129 : vector<8x128xf32>
    %131 = math.exp %130 : vector<8x128xf32>
    %cst_38 = arith.constant 1.000000e+00 : f32
    %132 = vector.broadcast %cst_38 : f32 to vector<8x128xf32>
    %133 = arith.addf %132, %131 : vector<8x128xf32>
    %134 = arith.divf %132, %133 : vector<8x128xf32>
    %135 = math.tanh %129 : vector<8x128xf32>
    %136 = arith.select %20, %135, %134 : vector<8x128xi1>, vector<8x128xf32>
    %137 = vector.extract_strided_slice %136 {offsets = [0, 0], sizes = [8, 32], strides = [1, 1]} : vector<8x128xf32> to vector<8x32xf32>
    %138 = vector.extract_strided_slice %136 {offsets = [0, 32], sizes = [8, 32], strides = [1, 1]} : vector<8x128xf32> to vector<8x32xf32>
    %139 = vector.extract_strided_slice %136 {offsets = [0, 64], sizes = [8, 32], strides = [1, 1]} : vector<8x128xf32> to vector<8x32xf32>
    %140 = vector.extract_strided_slice %136 {offsets = [0, 96], sizes = [8, 32], strides = [1, 1]} : vector<8x128xf32> to vector<8x32xf32>
    %141 = arith.mulf %138, %118 : vector<8x32xf32>
    %142 = arith.mulf %137, %139 : vector<8x32xf32>
    %143 = arith.addf %141, %142 : vector<8x32xf32>
    %144 = math.tanh %143 : vector<8x32xf32>
    %145 = arith.mulf %140, %144 : vector<8x32xf32>
    %146 = arith.index_cast %124 : i32 to index
    %c0_39 = arith.constant 0 : index
    %147 = vector.load %arg9[%146, %c0_39] : memref<64x32xf32, #tpu.memory_space<vmem>>, vector<8x32xf32>
    tpu.vector_store %arg9[%146, %c0_39], %145 {strides = array<i32>} : memref<64x32xf32, #tpu.memory_space<vmem>>, vector<8x32xf32>,
    %c5_i32 = arith.constant 5 : i32
    %c8_i32_40 = arith.constant 8 : i32
    %148 = arith.muli %c5_i32, %c8_i32_40 : i32
    %149 = tpu.assume_multiple %148, 8 : i32
    %150 = arith.index_cast %149 : i32 to index
    %c0_41 = arith.constant 0 : index
    %151 = vector.load %arg10[%150, %c0_41] : memref<64x128xf32, #tpu.memory_space<vmem>>, vector<8x128xf32>
    %152 = arith.truncf %145 : vector<8x32xf32> to vector<8x32xbf16>
    %cst_42 = arith.constant dense<0.000000e+00> : vector<8x128xf32>
    %153 = tpu.matmul %152, %14, %cst_42 {dimension_numbers = #tpu.dot_dimension_numbers<[1], [0], [0], [1], [0, 0, 1, 1], [], []>} : vector<8x32xbf16>, vector<32x128xbf16>, vector<8x128xf32> -> vector<8x128xf32>
    %154 = arith.addf %151, %153 : vector<8x128xf32>
    %155 = arith.negf %154 : vector<8x128xf32>
    %156 = math.exp %155 : vector<8x128xf32>
    %cst_43 = arith.constant 1.000000e+00 : f32
    %157 = vector.broadcast %cst_43 : f32 to vector<8x128xf32>
    %158 = arith.addf %157, %156 : vector<8x128xf32>
    %159 = arith.divf %157, %158 : vector<8x128xf32>
    %160 = math.tanh %154 : vector<8x128xf32>
    %161 = arith.select %20, %160, %159 : vector<8x128xi1>, vector<8x128xf32>
    %162 = vector.extract_strided_slice %161 {offsets = [0, 0], sizes = [8, 32], strides = [1, 1]} : vector<8x128xf32> to vector<8x32xf32>
    %163 = vector.extract_strided_slice %161 {offsets = [0, 32], sizes = [8, 32], strides = [1, 1]} : vector<8x128xf32> to vector<8x32xf32>
    %164 = vector.extract_strided_slice %161 {offsets = [0, 64], sizes = [8, 32], strides = [1, 1]} : vector<8x128xf32> to vector<8x32xf32>
    %165 = vector.extract_strided_slice %161 {offsets = [0, 96], sizes = [8, 32], strides = [1, 1]} : vector<8x128xf32> to vector<8x32xf32>
    %166 = arith.mulf %163, %143 : vector<8x32xf32>
    %167 = arith.mulf %162, %164 : vector<8x32xf32>
    %168 = arith.addf %166, %167 : vector<8x32xf32>
    %169 = math.tanh %168 : vector<8x32xf32>
    %170 = arith.mulf %165, %169 : vector<8x32xf32>
    %171 = arith.index_cast %149 : i32 to index
    %c0_44 = arith.constant 0 : index
    %172 = vector.load %arg9[%171, %c0_44] : memref<64x32xf32, #tpu.memory_space<vmem>>, vector<8x32xf32>
    tpu.vector_store %arg9[%171, %c0_44], %170 {strides = array<i32>} : memref<64x32xf32, #tpu.memory_space<vmem>>, vector<8x32xf32>,
    %c6_i32 = arith.constant 6 : i32
    %c8_i32_45 = arith.constant 8 : i32
    %173 = arith.muli %c6_i32, %c8_i32_45 : i32
    %174 = tpu.assume_multiple %173, 8 : i32
    %175 = arith.index_cast %174 : i32 to index
    %c0_46 = arith.constant 0 : index
    %176 = vector.load %arg10[%175, %c0_46] : memref<64x128xf32, #tpu.memory_space<vmem>>, vector<8x128xf32>
    %177 = arith.truncf %170 : vector<8x32xf32> to vector<8x32xbf16>
    %cst_47 = arith.constant dense<0.000000e+00> : vector<8x128xf32>
    %178 = tpu.matmul %177, %14, %cst_47 {dimension_numbers = #tpu.dot_dimension_numbers<[1], [0], [0], [1], [0, 0, 1, 1], [], []>} : vector<8x32xbf16>, vector<32x128xbf16>, vector<8x128xf32> -> vector<8x128xf32>
    %179 = arith.addf %176, %178 : vector<8x128xf32>
    %180 = arith.negf %179 : vector<8x128xf32>
    %181 = math.exp %180 : vector<8x128xf32>
    %cst_48 = arith.constant 1.000000e+00 : f32
    %182 = vector.broadcast %cst_48 : f32 to vector<8x128xf32>
    %183 = arith.addf %182, %181 : vector<8x128xf32>
    %184 = arith.divf %182, %183 : vector<8x128xf32>
    %185 = math.tanh %179 : vector<8x128xf32>
    %186 = arith.select %20, %185, %184 : vector<8x128xi1>, vector<8x128xf32>
    %187 = vector.extract_strided_slice %186 {offsets = [0, 0], sizes = [8, 32], strides = [1, 1]} : vector<8x128xf32> to vector<8x32xf32>
    %188 = vector.extract_strided_slice %186 {offsets = [0, 32], sizes = [8, 32], strides = [1, 1]} : vector<8x128xf32> to vector<8x32xf32>
    %189 = vector.extract_strided_slice %186 {offsets = [0, 64], sizes = [8, 32], strides = [1, 1]} : vector<8x128xf32> to vector<8x32xf32>
    %190 = vector.extract_strided_slice %186 {offsets = [0, 96], sizes = [8, 32], strides = [1, 1]} : vector<8x128xf32> to vector<8x32xf32>
    %191 = arith.mulf %188, %168 : vector<8x32xf32>
    %192 = arith.mulf %187, %189 : vector<8x32xf32>
    %193 = arith.addf %191, %192 : vector<8x32xf32>
    %194 = math.tanh %193 : vector<8x32xf32>
    %195 = arith.mulf %190, %194 : vector<8x32xf32>
    %196 = arith.index_cast %174 : i32 to index
    %c0_49 = arith.constant 0 : index
    %197 = vector.load %arg9[%196, %c0_49] : memref<64x32xf32, #tpu.memory_space<vmem>>, vector<8x32xf32>
    tpu.vector_store %arg9[%196, %c0_49], %195 {strides = array<i32>} : memref<64x32xf32, #tpu.memory_space<vmem>>, vector<8x32xf32>,
    %c7_i32 = arith.constant 7 : i32
    %c8_i32_50 = arith.constant 8 : i32
    %198 = arith.muli %c7_i32, %c8_i32_50 : i32
    %199 = tpu.assume_multiple %198, 8 : i32
    %200 = arith.index_cast %199 : i32 to index
    %c0_51 = arith.constant 0 : index
    %201 = vector.load %arg10[%200, %c0_51] : memref<64x128xf32, #tpu.memory_space<vmem>>, vector<8x128xf32>
    %202 = arith.truncf %195 : vector<8x32xf32> to vector<8x32xbf16>
    %cst_52 = arith.constant dense<0.000000e+00> : vector<8x128xf32>
    %203 = tpu.matmul %202, %14, %cst_52 {dimension_numbers = #tpu.dot_dimension_numbers<[1], [0], [0], [1], [0, 0, 1, 1], [], []>} : vector<8x32xbf16>, vector<32x128xbf16>, vector<8x128xf32> -> vector<8x128xf32>
    %204 = arith.addf %201, %203 : vector<8x128xf32>
    %205 = arith.negf %204 : vector<8x128xf32>
    %206 = math.exp %205 : vector<8x128xf32>
    %cst_53 = arith.constant 1.000000e+00 : f32
    %207 = vector.broadcast %cst_53 : f32 to vector<8x128xf32>
    %208 = arith.addf %207, %206 : vector<8x128xf32>
    %209 = arith.divf %207, %208 : vector<8x128xf32>
    %210 = math.tanh %204 : vector<8x128xf32>
    %211 = arith.select %20, %210, %209 : vector<8x128xi1>, vector<8x128xf32>
    %212 = vector.extract_strided_slice %211 {offsets = [0, 0], sizes = [8, 32], strides = [1, 1]} : vector<8x128xf32> to vector<8x32xf32>
    %213 = vector.extract_strided_slice %211 {offsets = [0, 32], sizes = [8, 32], strides = [1, 1]} : vector<8x128xf32> to vector<8x32xf32>
    %214 = vector.extract_strided_slice %211 {offsets = [0, 64], sizes = [8, 32], strides = [1, 1]} : vector<8x128xf32> to vector<8x32xf32>
    %215 = vector.extract_strided_slice %211 {offsets = [0, 96], sizes = [8, 32], strides = [1, 1]} : vector<8x128xf32> to vector<8x32xf32>
    %216 = arith.mulf %213, %193 : vector<8x32xf32>
    %217 = arith.mulf %212, %214 : vector<8x32xf32>
    %218 = arith.addf %216, %217 : vector<8x32xf32>
    %219 = math.tanh %218 : vector<8x32xf32>
    %220 = arith.mulf %215, %219 : vector<8x32xf32>
    %221 = arith.index_cast %199 : i32 to index
    %c0_54 = arith.constant 0 : index
    %222 = vector.load %arg9[%221, %c0_54] : memref<64x32xf32, #tpu.memory_space<vmem>>, vector<8x32xf32>
    tpu.vector_store %arg9[%221, %c0_54], %220 {strides = array<i32>} : memref<64x32xf32, #tpu.memory_space<vmem>>, vector<8x32xf32>,
    %c8_i32_55 = arith.constant 8 : i32
    %c1_i32_56 = arith.constant 1 : i32
    %223 = arith.cmpi eq, %arg0, %c1_i32_56 : i32
    %224 = arith.extui %223 : i1 to i32
    %c0_i32_57 = arith.constant 0 : i32
    %225 = arith.cmpi ne, %224, %c0_i32_57 : i32
    scf.if %225 {
      %226 = arith.truncf %220 : vector<8x32xf32> to vector<8x32xbf16>
      %c0_58 = arith.constant 0 : index
      %c0_59 = arith.constant 0 : index
      %227 = vector.load %arg6[%c0_58, %c0_59] : memref<32x128xbf16, #tpu.memory_space<vmem>>, vector<32x128xbf16>
      %cst_60 = arith.constant dense<0.000000e+00> : vector<8x128xf32>
      %228 = tpu.matmul %226, %227, %cst_60 {dimension_numbers = #tpu.dot_dimension_numbers<[1], [0], [0], [1], [0, 0, 1, 1], [], []>} : vector<8x32xbf16>, vector<32x128xbf16>, vector<8x128xf32> -> vector<8x128xf32>
      %c0_61 = arith.constant 0 : index
      %c0_62 = arith.constant 0 : index
      %229 = vector.load %arg7[%c0_61, %c0_62] : memref<1x128xf32, #tpu.memory_space<vmem>>, vector<1x128xf32>
      %230 = vector.broadcast %229 : vector<1x128xf32> to vector<8x128xf32>
      %231 = arith.addf %228, %230 : vector<8x128xf32>
      %c0_63 = arith.constant 0 : index
      %c0_64 = arith.constant 0 : index
      %232 = vector.load %arg8[%c0_63, %c0_64] : memref<8x128xf32, #tpu.memory_space<vmem>>, vector<8x128xf32>
      tpu.vector_store %arg8[%c0_63, %c0_64], %231 {strides = array<i32>} : memref<8x128xf32, #tpu.memory_space<vmem>>, vector<8x128xf32>,
    } else {
    }
    return
  }
  func.func @transform_1(%arg0: i32, %arg1: memref<64xi32, #tpu.memory_space<smem>>) -> (i32, i32, i32) {
    %c0_i32 = arith.constant 0 : i32
    %c0_i32_0 = arith.constant 0 : i32
    %c0_i32_1 = arith.constant 0 : i32
    return %arg0, %c0_i32, %c0_i32_0 : i32, i32, i32
  }
  func.func @transform_2(%arg0: i32, %arg1: memref<64xi32, #tpu.memory_space<smem>>) -> (i32, i32, i32) {
    %c0_i32 = arith.constant 0 : i32
    %c0_i32_0 = arith.constant 0 : i32
    %c0_i32_1 = arith.constant 0 : i32
    return %arg0, %c0_i32, %c0_i32_0 : i32, i32, i32
  }
  func.func @transform_3(%arg0: i32, %arg1: memref<64xi32, #tpu.memory_space<smem>>) -> (i32, i32, i32) {
    %c0_i32 = arith.constant 0 : i32
    %c0_i32_0 = arith.constant 0 : i32
    %c0_i32_1 = arith.constant 0 : i32
    return %arg0, %c0_i32, %c0_i32_0 : i32, i32, i32
  }
  func.func @transform_4(%arg0: i32, %arg1: memref<64xi32, #tpu.memory_space<smem>>) -> (i32, i32) {
    %c0_i32 = arith.constant 0 : i32
    %c0_i32_0 = arith.constant 0 : i32
    %c0_i32_1 = arith.constant 0 : i32
    return %c0_i32, %c0_i32_0 : i32, i32
  }
  func.func @transform_5(%arg0: i32, %arg1: memref<64xi32, #tpu.memory_space<smem>>) -> (i32, i32) {
    %c0_i32 = arith.constant 0 : i32
    %c0_i32_0 = arith.constant 0 : i32
    %c0_i32_1 = arith.constant 0 : i32
    return %c0_i32, %c0_i32_0 : i32, i32
  }
  func.func @transform_6(%arg0: i32, %arg1: memref<64xi32, #tpu.memory_space<smem>>) -> (i32, i32) {
    %c0_i32 = arith.constant 0 : i32
    %c0_i32_0 = arith.constant 0 : i32
    %c0_i32_1 = arith.constant 0 : i32
    return %c0_i32, %c0_i32_0 : i32, i32
  }
}

</mosaic_0001>

<llo_original>
// kernel: lstm_model_forward.1
$region0: #{lstm_model_forward.1}
  #allocation0 [shape = 'u32[]', space=smem, size = 0x4, offset = 0x4, fixed_abs, tag = 'smem constant byte address 0x4 - core index']
  #allocation1 [shape = 'u32[144,128]{1,0:T(1,128)}', space=vmem, size = 0x12000, scoped, tag = 'internal scratch']
  #allocation2 [shape = 'f32[64,32]{1,0:T(8,128)}', space=vmem, size = 0x8000, scoped, tag = 'scratch operand']
  #allocation3 [shape = 'f32[64,128]{1,0:T(8,128)}', space=vmem, size = 0x8000, scoped, tag = 'scratch operand']
  #allocation4 [shape = 's32[2]{0}', space=sflag, size = 0x8, scoped, tag = 'scratch operand']
  #allocation5 [shape = 's32[1]{0}', space=sflag, size = 0x4, scoped, tag = 'scoped memory for lstm_model_forward.1']
  #allocation6 [shape = 'u8[512]{0}', space=smem, size = 0x200, scoped, tag = 'prefetched SMEM operand 0']
  #allocation7 [shape = 's32[]', space=sflag, size = 0x4, offset = 0, fixed_abs, tag = 'sflag constant byte address 0x0 - dummy sync flag']
  #allocation8 [shape = 's32[]', space=sflag, size = 0x4, offset = 0, fixed_abs, tag = 'sflag constant byte address 0x0 - dummy sync flag']
  %s0 = inlined_call_operand.vmem [shape: s32[64], index: 0, kind: input, shape index: {}]
  %s1 = inlined_call_operand.vmem [shape: f32[16,32], index: 1, kind: input, shape index: {}]
  %s2 = inlined_call_operand.vmem [shape: bf16[2,32,128], index: 2, kind: input, shape index: {}]
  %s3 = inlined_call_operand.vmem [shape: bf16[2,32,128], index: 3, kind: input, shape index: {}]
  %s4 = inlined_call_operand.vmem [shape: f32[2,1,128], index: 4, kind: input, shape index: {}]
  %s5 = inlined_call_operand.vmem [shape: bf16[32,128], index: 5, kind: input, shape index: {}]
  %s6 = inlined_call_operand.vmem [shape: f32[1,128], index: 6, kind: input, shape index: {}]
  %s7 = inlined_call_operand.vmem [shape: f32[8,128], index: 7, kind: output, shape index: {}]
  %s8 = sld [smem:[#allocation0]]
  $region132: #{lstm_model_forward.1} parent=0
    _
  %s10 = ssub.s32 1, %s8
  %s11 = scalar_select 0, %s10, %s8
  %s12 = sshll.u32 %s0, 4
  %s13 = int_to_ptr.vmem [resolvable:$true] %s12
  %15 = dma.vmem_to_smem %s13, 16, [#allocation6], [#allocation5]
  %16 = dma.done [#allocation5], 16
  %17 = sfence
  loop: start=0, step=1, limit=4
  $region2: #{lstm_model_forward.1} parent=0 // loop_pre_header
    _
  $region3: #{lstm_model_forward.1} parent=0 // loop_header
    %s19 = sphi 0, %s23
    %p20 = scmp.ge.s32.totalorder %s19, 4
    %s29 = sphi 0, %s31
    %s32 = sphi 0, %s29
    %s33 = sphi 0, %s32
    %s49 = sphi 0, %s33
    %s55 = sphi 0, %s57
    %s58 = sphi 0, %s55
    %s59 = sphi 0, %s58
    %s75 = sphi 0, %s59
    %s81 = sphi 0, %s83
    %s84 = sphi 0, %s81
    %s85 = sphi 0, %s84
    %s101 = sphi 0, %s85
    %s105 = sphi 0, %s105
    %s107 = sphi 0, %s105
    %s108 = sphi 0, %s107
    %s122 = sphi 0, %s108
    %s126 = sphi 0, %s126
    %s128 = sphi 0, %s126
    %s129 = sphi 0, %s128
    %s143 = sphi 0, %s129
    %s147 = sphi 0, %s147
    %s149 = sphi 0, %s147
    %s150 = sphi 0, %s149
    %s164 = sphi 0, %s150
  $region4: #{lstm_model_forward.1} parent=0 // loop_header_branch
    %22 = sbr.rel (%p20) target = $region8
  $region5: #{lstm_model_forward.1} parent=0 // loop_body
    %s24 = ssub.s32 %s19, 1
    %s25 = ssub.s32 %s19, 2
    %s26 = sadd.s32 %s19, 1
    %s27 = ssub.s32 %s19, %s26
    %p28 = scmp.eq.s32.totalorder %s27, 0
    %s30 = sadd.s32 %s29, 1
    %s31 = scalar_select %p28, %s29, %s30
    %p34 = pneg %p28
    %p35 = scmp.eq.s32.totalorder %s19, 1
    %p36 = por %p34, %p35
    %p37 = scmp.ne.s32.totalorder %s29, %s32
    %p38 = scmp.eq.s32.totalorder %s19, 0
    %p39 = por %p37, %p38
    %p40 = scmp.ne.s32.totalorder %s29, %s32
    %p41 = scmp.eq.s32.totalorder %s24, 1
    %p42 = por %p40, %p41
    %p43 = scmp.ne.s32.totalorder %s32, %s33
    %p44 = scmp.eq.s32.totalorder %s24, 0
    %p45 = por %p43, %p44
    %p46 = scmp.ne.s32.totalorder %s32, %s33
    %p47 = scmp.eq.s32.totalorder %s25, 1
    %p48 = por %p46, %p47
    %p50 = scmp.ne.s32.totalorder %s33, %s49
    %p51 = scmp.eq.s32.totalorder %s25, 0
    %p52 = por %p50, %p51
    %s53 = ssub.s32 %s19, %s26
    %p54 = scmp.eq.s32.totalorder %s53, 0
    %s56 = sadd.s32 %s55, 1
    %s57 = scalar_select %p54, %s55, %s56
    %p60 = pneg %p54
    %p61 = scmp.eq.s32.totalorder %s19, 1
    %p62 = por %p60, %p61
    %p63 = scmp.ne.s32.totalorder %s55, %s58
    %p64 = scmp.eq.s32.totalorder %s19, 0
    %p65 = por %p63, %p64
    %p66 = scmp.ne.s32.totalorder %s55, %s58
    %p67 = scmp.eq.s32.totalorder %s24, 1
    %p68 = por %p66, %p67
    %p69 = scmp.ne.s32.totalorder %s58, %s59
    %p70 = scmp.eq.s32.totalorder %s24, 0
    %p71 = por %p69, %p70
    %p72 = scmp.ne.s32.totalorder %s58, %s59
    %p73 = scmp.eq.s32.totalorder %s25, 1
    %p74 = por %p72, %p73
    %p76 = scmp.ne.s32.totalorder %s59, %s75
    %p77 = scmp.eq.s32.totalorder %s25, 0
    %p78 = por %p76, %p77
    %s79 = ssub.s32 %s19, %s26
    %p80 = scmp.eq.s32.totalorder %s79, 0
    %s82 = sadd.s32 %s81, 1
    %s83 = scalar_select %p80, %s81, %s82
    %p86 = pneg %p80
    %p87 = scmp.eq.s32.totalorder %s19, 1
    %p88 = por %p86, %p87
    %p89 = scmp.ne.s32.totalorder %s81, %s84
    %p90 = scmp.eq.s32.totalorder %s19, 0
    %p91 = por %p89, %p90
    %p92 = scmp.ne.s32.totalorder %s81, %s84
    %p93 = scmp.eq.s32.totalorder %s24, 1
    %p94 = por %p92, %p93
    %p95 = scmp.ne.s32.totalorder %s84, %s85
    %p96 = scmp.eq.s32.totalorder %s24, 0
    %p97 = por %p95, %p96
    %p98 = scmp.ne.s32.totalorder %s84, %s85
    %p99 = scmp.eq.s32.totalorder %s25, 1
    %p100 = por %p98, %p99
    %p102 = scmp.ne.s32.totalorder %s85, %s101
    %p103 = scmp.eq.s32.totalorder %s25, 0
    %p104 = por %p102, %p103
    %s106 = sadd.s32 %s105, 1
    %p109 = scmp.eq.s32.totalorder %s19, 1
    %p110 = scmp.ne.s32.totalorder %s105, %s107
    %p111 = scmp.eq.s32.totalorder %s19, 0
    %p112 = por %p110, %p111
    %p113 = scmp.ne.s32.totalorder %s105, %s107
    %p114 = scmp.eq.s32.totalorder %s24, 1
    %p115 = por %p113, %p114
    %p116 = scmp.ne.s32.totalorder %s107, %s108
    %p117 = scmp.eq.s32.totalorder %s24, 0
    %p118 = por %p116, %p117
    %p119 = scmp.ne.s32.totalorder %s107, %s108
    %p120 = scmp.eq.s32.totalorder %s25, 1
    %p121 = por %p119, %p120
    %p123 = scmp.ne.s32.totalorder %s108, %s122
    %p124 = scmp.eq.s32.totalorder %s25, 0
    %p125 = por %p123, %p124
    %s127 = sadd.s32 %s126, 1
    %p130 = scmp.eq.s32.totalorder %s19, 1
    %p131 = scmp.ne.s32.totalorder %s126, %s128
    %p132 = scmp.eq.s32.totalorder %s19, 0
    %p133 = por %p131, %p132
    %p134 = scmp.ne.s32.totalorder %s126, %s128
    %p135 = scmp.eq.s32.totalorder %s24, 1
    %p136 = por %p134, %p135
    %p137 = scmp.ne.s32.totalorder %s128, %s129
    %p138 = scmp.eq.s32.totalorder %s24, 0
    %p139 = por %p137, %p138
    %p140 = scmp.ne.s32.totalorder %s128, %s129
    %p141 = scmp.eq.s32.totalorder %s25, 1
    %p142 = por %p140, %p141
    %p144 = scmp.ne.s32.totalorder %s129, %s143
    %p145 = scmp.eq.s32.totalorder %s25, 0
    %p146 = por %p144, %p145
    %s148 = sadd.s32 %s147, 1
    %p151 = scmp.eq.s32.totalorder %s19, 1
    %p152 = scmp.ne.s32.totalorder %s147, %s149
    %p153 = scmp.eq.s32.totalorder %s19, 0
    %p154 = por %p152, %p153
    %p155 = scmp.ne.s32.totalorder %s147, %s149
    %p156 = scmp.eq.s32.totalorder %s24, 1
    %p157 = por %p155, %p156
    %p158 = scmp.ne.s32.totalorder %s149, %s150
    %p159 = scmp.eq.s32.totalorder %s24, 0
    %p160 = por %p158, %p159
    %p161 = scmp.ne.s32.totalorder %s149, %s150
    %p162 = scmp.eq.s32.totalorder %s25, 1
    %p163 = por %p161, %p162
    %p165 = scmp.ne.s32.totalorder %s150, %s164
    %p166 = scmp.eq.s32.totalorder %s25, 0
    %p167 = por %p165, %p166
    %p168 = scmp.le.s32.totalorder 1, %s19
    %p169 = scmp.lt.s32.totalorder %s19, 3
    %p170 = pnand %p168, %p169
    %p171 = pneg %p170
    // Predicated region
    $region9: #{lstm_model_forward.1} parent=5 // pred_check
      _
    $region10: #{lstm_model_forward.1} parent=5 // pred_check_branch
      %173 = sbr.rel (%p170) target = $region12
    $region11: #{lstm_model_forward.1} parent=5 // pred_region
      %s174 = ssub.s32 %s19, 1
      // Predicated region
      $region13: #{lstm_model_forward.1} parent=11 // pred_check
        %p175 = pneg %p118
      $region14: #{lstm_model_forward.1} parent=11 // pred_check_branch
        %177 = sbr.rel (%p175) target = $region16
      $region15: #{lstm_model_forward.1} parent=11 // pred_region
        _
      $region16: #{lstm_model_forward.1} parent=11 // pred_fallthru
        _
      // Predicated region
      $region17: #{lstm_model_forward.1} parent=11 // pred_check
        %p178 = pneg %p139
      $region18: #{lstm_model_forward.1} parent=11 // pred_check_branch
        %180 = sbr.rel (%p178) target = $region20
      $region19: #{lstm_model_forward.1} parent=11 // pred_region
        _
      $region20: #{lstm_model_forward.1} parent=11 // pred_fallthru
        _
    $region12: #{lstm_model_forward.1} parent=5 // pred_fallthru
      _
    %p181 = scmp.lt.s32.totalorder %s19, 2
    // Predicated region
    $region21: #{lstm_model_forward.1} parent=5 // pred_check
      %p182 = pneg %p181
    $region22: #{lstm_model_forward.1} parent=5 // pred_check_branch
      %184 = sbr.rel (%p182) target = $region24
    $region23: #{lstm_model_forward.1} parent=5 // pred_region
      // Predicated region
      $region25: #{lstm_model_forward.1} parent=23 // pred_check
        %p185 = pneg %p39
      $region26: #{lstm_model_forward.1} parent=23 // pred_check_branch
        %187 = sbr.rel (%p185) target = $region28
      $region27: #{lstm_model_forward.1} parent=23 // pred_region
        %p188 = scmp.lt.s32.totalorder %s19, 1
        %s189 = scalar_select %p188, %s19, 1
        %s190 = smul.addr %s189, 4
        %s191 = smul.addr %s190, 4
        %s192 = scalar_lea.vmem %s2, %s191
      $region28: #{lstm_model_forward.1} parent=23 // pred_fallthru
        _
      // Predicated region
      $region29: #{lstm_model_forward.1} parent=23 // pred_check
        %p193 = pneg %p65
      $region30: #{lstm_model_forward.1} parent=23 // pred_check_branch
        %195 = sbr.rel (%p193) target = $region32
      $region31: #{lstm_model_forward.1} parent=23 // pred_region
        %p196 = scmp.lt.s32.totalorder %s19, 1
        %s197 = scalar_select %p196, %s19, 1
        %s198 = smul.addr %s197, 4
        %s199 = smul.addr %s198, 4
        %s200 = scalar_lea.vmem %s3, %s199
      $region32: #{lstm_model_forward.1} parent=23 // pred_fallthru
        _
      // Predicated region
      $region33: #{lstm_model_forward.1} parent=23 // pred_check
        %p201 = pneg %p91
      $region34: #{lstm_model_forward.1} parent=23 // pred_check_branch
        %203 = sbr.rel (%p201) target = $region36
      $region35: #{lstm_model_forward.1} parent=23 // pred_region
        %p204 = scmp.lt.s32.totalorder %s19, 1
        %s205 = scalar_select %p204, %s19, 1
        %s206 = scalar_lea.vmem %s4, %s205
      $region36: #{lstm_model_forward.1} parent=23 // pred_fallthru
        _
    $region24: #{lstm_model_forward.1} parent=5 // pred_fallthru
      _
    %p207 = scmp.le.s32.totalorder 1, %s19
    %p208 = scmp.lt.s32.totalorder %s19, 3
    %p209 = pnand %p207, %p208
    %p210 = pneg %p209
    // Predicated region
    $region37: #{lstm_model_forward.1} parent=5 // pred_check
      _
    $region38: #{lstm_model_forward.1} parent=5 // pred_check_branch
      %212 = sbr.rel (%p209) target = $region40
    $region39: #{lstm_model_forward.1} parent=5 // pred_region
      %s213 = ssub.s32 %s19, 1
      %p214 = scmp.lt.s32.totalorder %s24, 1
      %s215 = scalar_select %p214, %s24, 1
      %s216 = smul.addr %s215, 4
      %s217 = smul.addr %s216, 4
      %s218 = scalar_lea.vmem %s2, %s217
      %p219 = pneg %p45
      %p220 = pneg %p42
      %p221 = scmp.lt.s32.totalorder %s24, 1
      %s222 = scalar_select %p221, %s24, 1
      %s223 = smul.addr %s222, 4
      %s224 = smul.addr %s223, 4
      %s225 = scalar_lea.vmem %s3, %s224
      %p226 = pneg %p71
      %p227 = pneg %p68
      %p228 = scmp.lt.s32.totalorder %s24, 1
      %s229 = scalar_select %p228, %s24, 1
      %s230 = scalar_lea.vmem %s4, %s229
      %p231 = pneg %p97
      %p232 = pneg %p94
      %p233 = pneg %p118
      %p234 = pneg %p115
      %p235 = pneg %p139
      %p236 = pneg %p136
      %p237 = pneg %p160
      %p238 = pneg %p157
      %p239 = scmp.lt.s32.totalorder %s24, 1
      %s240 = scalar_select %p239, %s24, 1
      %s241 = smul.addr %s240, 4
      %s242 = smul.addr %s241, 4
      %s243 = scalar_lea.vmem %s2, %s242
      %p244 = scmp.lt.s32.totalorder %s24, 1
      %s245 = scalar_select %p244, %s24, 1
      %s246 = smul.addr %s245, 4
      %s247 = smul.addr %s246, 4
      %s248 = scalar_lea.vmem %s3, %s247
      %p249 = scmp.lt.s32.totalorder %s24, 1
      %s250 = scalar_select %p249, %s24, 1
      %s251 = scalar_lea.vmem %s4, %s250
      %p253 = scmp.eq.s32.totalorder %s24, 0
      // Predicated region
      $region41: #{lstm_model_forward.1} parent=39 // pred_check
        %p254 = pneg %p253
      $region42: #{lstm_model_forward.1} parent=39 // pred_check_branch
        %256 = sbr.rel (%p254) target = $region44
      $region43: #{lstm_model_forward.1} parent=39 // pred_region
        %s257 = sld [smem:[#allocation6]]
        %s258 = scalar_lea.vmem %s1, %s257
        %p260 = scmp.lt.u32.totalorder 1, 8
        %p261 = pneg %p260
        // Predicated region
        $region45: #{lstm_model_forward.1} parent=43 // pred_check
          _
        $region46: #{lstm_model_forward.1} parent=43 // pred_check_branch
          %263 = sbr.rel (%p260) target = $region48
        $region47: #{lstm_model_forward.1} parent=43 // pred_region
          %s278 = sand.u32 1, 7
          %p279 = scmp.eq.s32.totalorder %s278, 0
          %p280 = pneg %p279
          // Predicated region
          $region60: #{lstm_model_forward.1} parent=47 // pred_check
            _
          $region61: #{lstm_model_forward.1} parent=47 // pred_check_branch
            %282 = sbr.rel (%p279) target = $region63
          $region62: #{lstm_model_forward.1} parent=47 // pred_region
            %s283 = sand.u32 1, 7
            %s284 = ssub.s32 1, %s283
            %s285 = scalar_lea.vmem %s258, %s284
            %s286 = ssub.s32 1, %s283
            %s287 = scalar_lea.vmem [#allocation2], %s286
            %s288 = sshllo.u32 0, %s283
            loop: start=0, step=1, limit=1
            $region64: #{lstm_model_forward.1} parent=62 // loop_pre_header
              _
            $region65: #{lstm_model_forward.1} parent=62 // loop_header
              %s290 = sphi 0, %s294
              %p291 = scmp.ge.s32.totalorder %s290, 1
              %s295 = sphi %s285, %s285
              %s296 = sphi %s287, %s287
            $region66: #{lstm_model_forward.1} parent=62 // loop_header_branch
              %293 = sbr.rel (%p291) target = $region70
            $region67: #{lstm_model_forward.1} parent=62 // loop_body
              %v297 = vld [vmem:[%s295] sm:%s288]
              %298 = vst [vmem:[%s296] sm:%s288] %v297
            $region68: #{lstm_model_forward.1} parent=62 // loop_footer
              %s294 = sadd.s32 1, %s290
            $region69: #{lstm_model_forward.1} parent=62 // loop_footer_branch
              %289 = sbr.rel target = $region65
            $region70: #{lstm_model_forward.1} parent=62 // loop_exit
              _
          $region63: #{lstm_model_forward.1} parent=47 // pred_fallthru
            _
        $region48: #{lstm_model_forward.1} parent=43 // pred_fallthru
          _
        // Predicated region
        $region49: #{lstm_model_forward.1} parent=43 // pred_check
          %p264 = pneg %p260
        $region50: #{lstm_model_forward.1} parent=43 // pred_check_branch
          %266 = sbr.rel (%p264) target = $region52
        $region51: #{lstm_model_forward.1} parent=43 // pred_region
          %s267 = sshllo.u32 0, 1
          loop: start=0, step=1, limit=1
          $region53: #{lstm_model_forward.1} parent=51 // loop_pre_header
            _
          $region54: #{lstm_model_forward.1} parent=51 // loop_header
            %s269 = sphi 0, %s273
            %p270 = scmp.ge.s32.totalorder %s269, 1
            %s274 = sphi %s258, %s258
            %s275 = sphi [#allocation2], [#allocation2]
          $region55: #{lstm_model_forward.1} parent=51 // loop_header_branch
            %272 = sbr.rel (%p270) target = $region59
          $region56: #{lstm_model_forward.1} parent=51 // loop_body
            %v276 = vld [vmem:[%s274] sm:%s267]
            %277 = vst [vmem:[%s275] sm:%s267] %v276
          $region57: #{lstm_model_forward.1} parent=51 // loop_footer
            %s273 = sadd.s32 1, %s269
          $region58: #{lstm_model_forward.1} parent=51 // loop_footer_branch
            %268 = sbr.rel target = $region54
          $region59: #{lstm_model_forward.1} parent=51 // loop_exit
            _
        $region52: #{lstm_model_forward.1} parent=43 // pred_fallthru
          _
        // Predicated region
        $region71: #{lstm_model_forward.1} parent=43 // pred_check
          _
        $region72: #{lstm_model_forward.1} parent=43 // pred_check_branch
          %301 = sbr.rel (0) target = $region74
        $region73: #{lstm_model_forward.1} parent=43 // pred_region
          %302 = vsyncadd [#allocation4], 16
        $region74: #{lstm_model_forward.1} parent=43 // pred_fallthru
          _
        loop: start=0, step=1, limit=64
        $region75: #{lstm_model_forward.1} parent=43 // loop_pre_header
          _
        $region76: #{lstm_model_forward.1} parent=43 // loop_header
          %s304 = sphi 0, %s308
          %p305 = scmp.ge.s32.totalorder %s304, 64
        $region77: #{lstm_model_forward.1} parent=43 // loop_header_branch
          %307 = sbr.rel (%p305) target = $region81
        $region78: #{lstm_model_forward.1} parent=43 // loop_body
          %s309 = sadd.s32 %s304, 1
          %p310 = scmp.lt.s32.totalorder %s309, 64
          // Predicated region
          $region82: #{lstm_model_forward.1} parent=78 // pred_check
            %p311 = pneg %p310
          $region83: #{lstm_model_forward.1} parent=78 // pred_check_branch
            %313 = sbr.rel (%p311) target = $region85
          $region84: #{lstm_model_forward.1} parent=78 // pred_region
            %s314 = sld [smem:[#allocation6 + %s309]]
            %s315 = sand.u32 %s309, 1
            %s316 = scalar_lea.vmem %s1, %s314
            %s317 = scalar_lea.vmem [#allocation2], %s309
            %s318 = scalar_lea.sflag [#allocation4], %s315
            %p320 = scmp.lt.u32.totalorder 1, 8
            %p321 = pneg %p320
            // Predicated region
            $region86: #{lstm_model_forward.1} parent=84 // pred_check
              _
            $region87: #{lstm_model_forward.1} parent=84 // pred_check_branch
              %323 = sbr.rel (%p320) target = $region89
            $region88: #{lstm_model_forward.1} parent=84 // pred_region
              %s338 = sand.u32 1, 7
              %p339 = scmp.eq.s32.totalorder %s338, 0
              %p340 = pneg %p339
              // Predicated region
              $region101: #{lstm_model_forward.1} parent=88 // pred_check
                _
              $region102: #{lstm_model_forward.1} parent=88 // pred_check_branch
                %342 = sbr.rel (%p339) target = $region104
              $region103: #{lstm_model_forward.1} parent=88 // pred_region
                %s343 = sand.u32 1, 7
                %s344 = ssub.s32 1, %s343
                %s345 = scalar_lea.vmem %s316, %s344
                %s346 = ssub.s32 1, %s343
                %s347 = scalar_lea.vmem %s317, %s346 [#allocation2]
                %s348 = sshllo.u32 0, %s343
                loop: start=0, step=1, limit=1
                $region105: #{lstm_model_forward.1} parent=103 // loop_pre_header
                  _
                $region106: #{lstm_model_forward.1} parent=103 // loop_header
                  %s350 = sphi 0, %s354
                  %p351 = scmp.ge.s32.totalorder %s350, 1
                  %s355 = sphi %s345, %s345
                  %s356 = sphi %s347, %s347
                $region107: #{lstm_model_forward.1} parent=103 // loop_header_branch
                  %353 = sbr.rel (%p351) target = $region111
                $region108: #{lstm_model_forward.1} parent=103 // loop_body
                  %v357 = vld [vmem:[%s355] sm:%s348]
                  %358 = vst [vmem:[%s356] sm:%s348] %v357
                $region109: #{lstm_model_forward.1} parent=103 // loop_footer
                  %s354 = sadd.s32 1, %s350
                $region110: #{lstm_model_forward.1} parent=103 // loop_footer_branch
                  %349 = sbr.rel target = $region106
                $region111: #{lstm_model_forward.1} parent=103 // loop_exit
                  _
              $region104: #{lstm_model_forward.1} parent=88 // pred_fallthru
                _
            $region89: #{lstm_model_forward.1} parent=84 // pred_fallthru
              _
            // Predicated region
            $region90: #{lstm_model_forward.1} parent=84 // pred_check
              %p324 = pneg %p320
            $region91: #{lstm_model_forward.1} parent=84 // pred_check_branch
              %326 = sbr.rel (%p324) target = $region93
            $region92: #{lstm_model_forward.1} parent=84 // pred_region
              %s327 = sshllo.u32 0, 1
              loop: start=0, step=1, limit=1
              $region94: #{lstm_model_forward.1} parent=92 // loop_pre_header
                _
              $region95: #{lstm_model_forward.1} parent=92 // loop_header
                %s329 = sphi 0, %s333
                %p330 = scmp.ge.s32.totalorder %s329, 1
                %s334 = sphi %s316, %s316
                %s335 = sphi %s317, %s317
              $region96: #{lstm_model_forward.1} parent=92 // loop_header_branch
                %332 = sbr.rel (%p330) target = $region100
              $region97: #{lstm_model_forward.1} parent=92 // loop_body
                %v336 = vld [vmem:[%s334] sm:%s327]
                %337 = vst [vmem:[%s335] sm:%s327] %v336
              $region98: #{lstm_model_forward.1} parent=92 // loop_footer
                %s333 = sadd.s32 1, %s329
              $region99: #{lstm_model_forward.1} parent=92 // loop_footer_branch
                %328 = sbr.rel target = $region95
              $region100: #{lstm_model_forward.1} parent=92 // loop_exit
                _
            $region93: #{lstm_model_forward.1} parent=84 // pred_fallthru
              _
            // Predicated region
            $region112: #{lstm_model_forward.1} parent=84 // pred_check
              _
            $region113: #{lstm_model_forward.1} parent=84 // pred_check_branch
              %361 = sbr.rel (0) target = $region115
            $region114: #{lstm_model_forward.1} parent=84 // pred_region
              %362 = vsyncadd %s318, 16
            $region115: #{lstm_model_forward.1} parent=84 // pred_fallthru
              _
          $region85: #{lstm_model_forward.1} parent=78 // pred_fallthru
            _
          %s363 = sand.u32 %s304, 1
          %s364 = scalar_lea.sflag [#allocation4], %s363
          %s365 = smul.u32 1, 1
          %s366 = sshll.u32 %s365, 4
          %367 = dma.done %s364, %s366
        $region79: #{lstm_model_forward.1} parent=43 // loop_footer
          %s308 = sadd.s32 1, %s304
        $region80: #{lstm_model_forward.1} parent=43 // loop_footer_branch
          %303 = sbr.rel target = $region76
        $region81: #{lstm_model_forward.1} parent=43 // loop_exit
          _
      $region44: #{lstm_model_forward.1} parent=39 // pred_fallthru
        _
      %v368 = vld [vmem:[#allocation2] sm:$0xff]
      %v369 = vld [vmem:[#allocation2 + $0x8] sm:$0xff]
      %v370 = vld [vmem:[#allocation2 + $0x10] sm:$0xff]
      %v371 = vld [vmem:[#allocation2 + $0x18] sm:$0xff]
      %v372 = vld [vmem:[#allocation2 + $0x20] sm:$0xff]
      %v373 = vld [vmem:[#allocation2 + $0x28] sm:$0xff]
      %v374 = vld [vmem:[#allocation2 + $0x30] sm:$0xff]
      %v375 = vld [vmem:[#allocation2 + $0x38] sm:$0xff]
      %v376 = vpack.c.bf16 %v369, %v368
      %v377 = vpack.c.bf16 %v371, %v370
      %v378 = vpack.c.bf16 %v373, %v372
      %v379 = vpack.c.bf16 %v375, %v374
      %v380 = vld [vmem:[%s243] sm:$0xf]
      %v381 = vld [vmem:[%s243 + $0x4] sm:$0xf]
      %v382 = vld [vmem:[%s243 + $0x8] sm:$0xf]
      %v383 = vld [vmem:[%s243 + $0xc] sm:$0xf]
      %v384 = vld [vmem:[%s251] sm:$0x1]
      %v386 = vlaneseq
      %v387 = vshrl.u32 %v386, 7
      %v388 = vsub.s32 0, %v387
      %v389 = vrot.slane %v384, %v388
      %v395 = vunpack.c.l.b16 %v380
      %v396 = vunpack.c.l.b16 %v381
      %v397 = vunpack.c.l.b16 %v382
      %v398 = vunpack.c.l.b16 %v383
      %v399 = vpack.c.b16 %v396, %v395
      %v400 = vpack.c.b16 %v398, %v397
      %vm403 = vcmask 261120
      %v405 = vsel %vm403, %v376, 0
      %v408 = vsel %vm403, %v377, 0
      %v411 = vsel %vm403, %v378, 0
      %v414 = vsel %vm403, %v379, 0
      %416 = vmatprep.subr.bf16.mxu0 0
      %417 = vmatpush1.bf16.msra.mxu0 %v399
      %418 = vmatprep.subr.bf16.mxu0 0
      %419 = vmatpush1.bf16.msra.mxu0 %v400
      %420 = vmatprep.subr.bf16.mxu0 0
      %421 = vmatpush1.bf16.msra.mxu0 0
      %422 = vmatprep.subr.bf16.mxu0 0
      %423 = vmatpush1.bf16.msra.mxu0 0
      %424 = vmatprep.subr.bf16.mxu0 0
      %425 = vmatpush1.bf16.msra.mxu0 0
      %426 = vmatprep.subr.bf16.mxu0 0
      %427 = vmatpush1.bf16.msra.mxu0 0
      %428 = vmatprep.subr.bf16.mxu0 0
      %429 = vmatpush1.bf16.msra.mxu0 0
      %430 = vmatprep.subr.bf16.mxu0 0
      %431 = vmatpush1.bf16.msra.mxu0 0
      %432 = vmatprep.subr.bf16.mxu0 0
      %433 = vmatpush1.bf16.msra.mxu0 0
      %434 = vmatprep.subr.bf16.mxu0 0
      %435 = vmatpush1.bf16.msra.mxu0 0
      %436 = vmatprep.subr.bf16.mxu0 0
      %437 = vmatpush1.bf16.msra.mxu0 0
      %438 = vmatprep.subr.bf16.mxu0 0
      %439 = vmatpush1.bf16.msra.mxu0 0
      %440 = vmatprep.subr.bf16.mxu0 0
      %441 = vmatpush1.bf16.msra.mxu0 0
      %442 = vmatprep.subr.bf16.mxu0 0
      %443 = vmatpush1.bf16.msra.mxu0 0
      %444 = vmatprep.subr.bf16.mxu0 0
      %445 = vmatpush1.bf16.msra.mxu0 0
      %446 = vmatprep.subr.bf16.mxu0 0
      %447 = vmatpush1.bf16.msra.mxu0 0
      %448 = vmatprep.mubr.bf16.mxu0 0
      %449 = vmatmul.mubr.bf16.gmra.mrb[0].mxu0 %v405
      %v450 = vpop.f32.mrb[0].mxu0
      %v451 = vadd.f32 %v389, %v450
      %v452 = vpop.f32.mrb[0].mxu0
      %v453 = vpop.f32.mrb[0].mxu0
      %v454 = vadd.f32 %v389, %v453
      %v455 = vpop.f32.mrb[0].mxu0
      %456 = vmatprep.mubr.bf16.mxu0 0
      %457 = vmatmul.mubr.bf16.gmra.mrb[0].mxu0 %v408
      %v458 = vpop.f32.mrb[0].mxu0
      %v459 = vadd.f32 %v389, %v458
      %v460 = vpop.f32.mrb[0].mxu0
      %v461 = vpop.f32.mrb[0].mxu0
      %v462 = vadd.f32 %v389, %v461
      %v463 = vpop.f32.mrb[0].mxu0
      %464 = vmatprep.mubr.bf16.mxu0 0
      %465 = vmatmul.mubr.bf16.gmra.mrb[0].mxu0 %v411
      %v466 = vpop.f32.mrb[0].mxu0
      %v467 = vadd.f32 %v389, %v466
      %v468 = vpop.f32.mrb[0].mxu0
      %v469 = vpop.f32.mrb[0].mxu0
      %v470 = vadd.f32 %v389, %v469
      %v471 = vpop.f32.mrb[0].mxu0
      %472 = vmatprep.mubr.bf16.mxu0 0
      %473 = vmatmul.mubr.bf16.gmra.mrb[0].mxu0 %v414
      %v474 = vpop.f32.mrb[0].mxu0
      %v475 = vadd.f32 %v389, %v474
      %v476 = vpop.f32.mrb[0].mxu0
      %v477 = vpop.f32.mrb[0].mxu0
      %v478 = vadd.f32 %v389, %v477
      %v479 = vpop.f32.mrb[0].mxu0
      %480 = vdwg.mxu0
      %481 = vst [vmem:[#allocation3] sm:$0xff] %v451
      %482 = vst [vmem:[#allocation3 + $0x8] sm:$0xff] %v454
      %483 = vst [vmem:[#allocation3 + $0x10] sm:$0xff] %v459
      %484 = vst [vmem:[#allocation3 + $0x18] sm:$0xff] %v462
      %485 = vst [vmem:[#allocation3 + $0x20] sm:$0xff] %v467
      %486 = vst [vmem:[#allocation3 + $0x28] sm:$0xff] %v470
      %487 = vst [vmem:[#allocation3 + $0x30] sm:$0xff] %v475
      %488 = vst [vmem:[#allocation3 + $0x38] sm:$0xff] %v478
      %v489 = vld [vmem:[%s248] sm:$0xf]
      %v490 = vld [vmem:[%s248 + $0x4] sm:$0xf]
      %v491 = vld [vmem:[%s248 + $0x8] sm:$0xf]
      %v492 = vld [vmem:[%s248 + $0xc] sm:$0xf]
      %v493 = vlaneseq
      %v494 = vand.u32 %v493, 127
      %vm495 = vcmp.ge.s32.totalorder %v494, 64
      %vm496 = vcmp.lt.s32.totalorder %v494, 96
      %vm497 = vmand %vm495, %vm496
      %v498 = vld [vmem:[#allocation3] sm:$0xff]
      %v503 = vunpack.c.l.b16 %v489
      %v504 = vunpack.c.l.b16 %v490
      %v505 = vunpack.c.l.b16 %v491
      %v506 = vunpack.c.l.b16 %v492
      %v507 = vpack.c.b16 %v504, %v503
      %v508 = vpack.c.b16 %v506, %v505
      %v512 = vsel %vm403, 0, 0
      %514 = vmatprep.subr.bf16.mxu0 0
      %515 = vmatpush1.bf16.msra.mxu0 %v507
      %516 = vmatprep.subr.bf16.mxu0 0
      %517 = vmatpush1.bf16.msra.mxu0 %v508
      %518 = vmatprep.subr.bf16.mxu0 0
      %519 = vmatpush1.bf16.msra.mxu0 0
      %520 = vmatprep.subr.bf16.mxu0 0
      %521 = vmatpush1.bf16.msra.mxu0 0
      %522 = vmatprep.subr.bf16.mxu0 0
      %523 = vmatpush1.bf16.msra.mxu0 0
      %524 = vmatprep.subr.bf16.mxu0 0
      %525 = vmatpush1.bf16.msra.mxu0 0
      %526 = vmatprep.subr.bf16.mxu0 0
      %527 = vmatpush1.bf16.msra.mxu0 0
      %528 = vmatprep.subr.bf16.mxu0 0
      %529 = vmatpush1.bf16.msra.mxu0 0
      %530 = vmatprep.subr.bf16.mxu0 0
      %531 = vmatpush1.bf16.msra.mxu0 0
      %532 = vmatprep.subr.bf16.mxu0 0
      %533 = vmatpush1.bf16.msra.mxu0 0
      %534 = vmatprep.subr.bf16.mxu0 0
      %535 = vmatpush1.bf16.msra.mxu0 0
      %536 = vmatprep.subr.bf16.mxu0 0
      %537 = vmatpush1.bf16.msra.mxu0 0
      %538 = vmatprep.subr.bf16.mxu0 0
      %539 = vmatpush1.bf16.msra.mxu0 0
      %540 = vmatprep.subr.bf16.mxu0 0
      %541 = vmatpush1.bf16.msra.mxu0 0
      %542 = vmatprep.subr.bf16.mxu0 0
      %543 = vmatpush1.bf16.msra.mxu0 0
      %544 = vmatprep.subr.bf16.mxu0 0
      %545 = vmatpush1.bf16.msra.mxu0 0
      %546 = vmatprep.mubr.bf16.mxu0 0
      %547 = vmatmul.mubr.bf16.gmra.mrb[0].mxu0 %v512
      %v548 = vpop.f32.mrb[0].mxu0
      %v549 = vadd.f32 0.0, %v548
      %v550 = vpop.f32.mrb[0].mxu0
      %v551 = vpop.f32.mrb[0].mxu0
      %v552 = vpop.f32.mrb[0].mxu0
      %553 = vdwg.mxu0
      %v554 = vadd.f32 %v498, %v549
      %v555 = vxor.u32 %v554, 2147483648
      %v556 = vmul.f32 %v555, 1.442695
      %v557 = vpow.pop %v556
      %v558 = vadd.f32 %v557, 1.0
      %v559 = vrcp.pop %v558
      %v560 = vmul.f32 1.0, %v559
      %v561 = vtanh.pop %v554
      %v562 = vsel %vm497, %v561, %v560
      %v563 = vmul.f32 %v562, 0.0
      %565 = vrot.lane.b32.xlu0 %v562, 64
      %v566 = vpop.permute.xlu0 %565
      %v568 = vmul.f32 %v562, %v566
      %570 = vrot.lane.b32.xlu0 %v568, 32
      %v571 = vpop.permute.xlu0 %570
      %v573 = vadd.f32 %v563, %v571
      %v574 = vtanh.pop %v573
      %576 = vrot.lane.b32.xlu0 %v574, 64
      %v577 = vpop.permute.xlu0 %576
      %v579 = vmul.f32 %v562, %v577
      %581 = vrot.lane.b32.xlu0 %v579, 32
      %v582 = vpop.permute.xlu0 %581
      %584 = vst.msk [vmem:[#allocation2] sm:$0xff] %vm403, %v582
      %s585 = scalar_lea.vmem [#allocation3], 8
      %v586 = vld [vmem:[%s585] sm:$0xff]
      %v587 = vpack.c.bf16 %v579, %v579
      %589 = vrot.lane.b32.xlu0 %v587, 32
      %v590 = vpop.permute.xlu0 %589
      %v592 = vsel %vm403, %v590, 0
      %594 = vmatprep.subr.bf16.mxu0 0
      %595 = vmatpush1.bf16.msra.mxu0 %v507
      %596 = vmatprep.subr.bf16.mxu0 0
      %597 = vmatpush1.bf16.msra.mxu0 %v508
      %598 = vmatprep.subr.bf16.mxu0 0
      %599 = vmatpush1.bf16.msra.mxu0 0
      %600 = vmatprep.subr.bf16.mxu0 0
      %601 = vmatpush1.bf16.msra.mxu0 0
      %602 = vmatprep.subr.bf16.mxu0 0
      %603 = vmatpush1.bf16.msra.mxu0 0
      %604 = vmatprep.subr.bf16.mxu0 0
      %605 = vmatpush1.bf16.msra.mxu0 0
      %606 = vmatprep.subr.bf16.mxu0 0
      %607 = vmatpush1.bf16.msra.mxu0 0
      %608 = vmatprep.subr.bf16.mxu0 0
      %609 = vmatpush1.bf16.msra.mxu0 0
      %610 = vmatprep.subr.bf16.mxu0 0
      %611 = vmatpush1.bf16.msra.mxu0 0
      %612 = vmatprep.subr.bf16.mxu0 0
      %613 = vmatpush1.bf16.msra.mxu0 0
      %614 = vmatprep.subr.bf16.mxu0 0
      %615 = vmatpush1.bf16.msra.mxu0 0
      %616 = vmatprep.subr.bf16.mxu0 0
      %617 = vmatpush1.bf16.msra.mxu0 0
      %618 = vmatprep.subr.bf16.mxu0 0
      %619 = vmatpush1.bf16.msra.mxu0 0
      %620 = vmatprep.subr.bf16.mxu0 0
      %621 = vmatpush1.bf16.msra.mxu0 0
      %622 = vmatprep.subr.bf16.mxu0 0
      %623 = vmatpush1.bf16.msra.mxu0 0
      %624 = vmatprep.subr.bf16.mxu0 0
      %625 = vmatpush1.bf16.msra.mxu0 0
      %626 = vmatprep.mubr.bf16.mxu0 0
      %627 = vmatmul.mubr.bf16.gmra.mrb[0].mxu0 %v592
      %v628 = vpop.f32.mrb[0].mxu0
      %v629 = vadd.f32 0.0, %v628
      %v630 = vpop.f32.mrb[0].mxu0
      %v631 = vpop.f32.mrb[0].mxu0
      %v632 = vpop.f32.mrb[0].mxu0
      %633 = vdwg.mxu0
      %v634 = vadd.f32 %v586, %v629
      %v635 = vxor.u32 %v634, 2147483648
      %v636 = vmul.f32 %v635, 1.442695
      %v637 = vpow.pop %v636
      %v638 = vadd.f32 %v637, 1.0
      %v639 = vrcp.pop %v638
      %v640 = vmul.f32 1.0, %v639
      %v641 = vtanh.pop %v634
      %v642 = vsel %vm497, %v641, %v640
      %v643 = vmul.f32 %v642, %v573
      %645 = vrot.lane.b32.xlu0 %v642, 64
      %v646 = vpop.permute.xlu0 %645
      %v648 = vmul.f32 %v642, %v646
      %650 = vrot.lane.b32.xlu0 %v648, 32
      %v651 = vpop.permute.xlu0 %650
      %v653 = vadd.f32 %v643, %v651
      %v654 = vtanh.pop %v653
      %656 = vrot.lane.b32.xlu0 %v654, 64
      %v657 = vpop.permute.xlu0 %656
      %v659 = vmul.f32 %v642, %v657
      %661 = vrot.lane.b32.xlu0 %v659, 32
      %v662 = vpop.permute.xlu0 %661
      %s664 = scalar_lea.vmem [#allocation2], 8
      %665 = vst.msk [vmem:[%s664] sm:$0xff] %vm403, %v662
      %s666 = scalar_lea.vmem [#allocation3], 16
      %v667 = vld [vmem:[%s666] sm:$0xff]
      %v668 = vpack.c.bf16 %v659, %v659
      %670 = vrot.lane.b32.xlu0 %v668, 32
      %v671 = vpop.permute.xlu0 %670
      %v673 = vsel %vm403, %v671, 0
      %675 = vmatprep.subr.bf16.mxu0 0
      %676 = vmatpush1.bf16.msra.mxu0 %v507
      %677 = vmatprep.subr.bf16.mxu0 0
      %678 = vmatpush1.bf16.msra.mxu0 %v508
      %679 = vmatprep.subr.bf16.mxu0 0
      %680 = vmatpush1.bf16.msra.mxu0 0
      %681 = vmatprep.subr.bf16.mxu0 0
      %682 = vmatpush1.bf16.msra.mxu0 0
      %683 = vmatprep.subr.bf16.mxu0 0
      %684 = vmatpush1.bf16.msra.mxu0 0
      %685 = vmatprep.subr.bf16.mxu0 0
      %686 = vmatpush1.bf16.msra.mxu0 0
      %687 = vmatprep.subr.bf16.mxu0 0
      %688 = vmatpush1.bf16.msra.mxu0 0
      %689 = vmatprep.subr.bf16.mxu0 0
      %690 = vmatpush1.bf16.msra.mxu0 0
      %691 = vmatprep.subr.bf16.mxu0 0
      %692 = vmatpush1.bf16.msra.mxu0 0
      %693 = vmatprep.subr.bf16.mxu0 0
      %694 = vmatpush1.bf16.msra.mxu0 0
      %695 = vmatprep.subr.bf16.mxu0 0
      %696 = vmatpush1.bf16.msra.mxu0 0
      %697 = vmatprep.subr.bf16.mxu0 0
      %698 = vmatpush1.bf16.msra.mxu0 0
      %699 = vmatprep.subr.bf16.mxu0 0
      %700 = vmatpush1.bf16.msra.mxu0 0
      %701 = vmatprep.subr.bf16.mxu0 0
      %702 = vmatpush1.bf16.msra.mxu0 0
      %703 = vmatprep.subr.bf16.mxu0 0
      %704 = vmatpush1.bf16.msra.mxu0 0
      %705 = vmatprep.subr.bf16.mxu0 0
      %706 = vmatpush1.bf16.msra.mxu0 0
      %707 = vmatprep.mubr.bf16.mxu0 0
      %708 = vmatmul.mubr.bf16.gmra.mrb[0].mxu0 %v673
      %v709 = vpop.f32.mrb[0].mxu0
      %v710 = vadd.f32 0.0, %v709
      %v711 = vpop.f32.mrb[0].mxu0
      %v712 = vpop.f32.mrb[0].mxu0
      %v713 = vpop.f32.mrb[0].mxu0
      %714 = vdwg.mxu0
      %v715 = vadd.f32 %v667, %v710
      %v716 = vxor.u32 %v715, 2147483648
      %v717 = vmul.f32 %v716, 1.442695
      %v718 = vpow.pop %v717
      %v719 = vadd.f32 %v718, 1.0
      %v720 = vrcp.pop %v719
      %v721 = vmul.f32 1.0, %v720
      %v722 = vtanh.pop %v715
      %v723 = vsel %vm497, %v722, %v721
      %v724 = vmul.f32 %v723, %v653
      %726 = vrot.lane.b32.xlu0 %v723, 64
      %v727 = vpop.permute.xlu0 %726
      %v729 = vmul.f32 %v723, %v727
      %731 = vrot.lane.b32.xlu0 %v729, 32
      %v732 = vpop.permute.xlu0 %731
      %v734 = vadd.f32 %v724, %v732
      %v735 = vtanh.pop %v734
      %737 = vrot.lane.b32.xlu0 %v735, 64
      %v738 = vpop.permute.xlu0 %737
      %v740 = vmul.f32 %v723, %v738
      %742 = vrot.lane.b32.xlu0 %v740, 32
      %v743 = vpop.permute.xlu0 %742
      %s745 = scalar_lea.vmem [#allocation2], 16
      %746 = vst.msk [vmem:[%s745] sm:$0xff] %vm403, %v743
      %s747 = scalar_lea.vmem [#allocation3], 24
      %v748 = vld [vmem:[%s747] sm:$0xff]
      %v749 = vpack.c.bf16 %v740, %v740
      %751 = vrot.lane.b32.xlu0 %v749, 32
      %v752 = vpop.permute.xlu0 %751
      %v754 = vsel %vm403, %v752, 0
      %756 = vmatprep.subr.bf16.mxu0 0
      %757 = vmatpush1.bf16.msra.mxu0 %v507
      %758 = vmatprep.subr.bf16.mxu0 0
      %759 = vmatpush1.bf16.msra.mxu0 %v508
      %760 = vmatprep.subr.bf16.mxu0 0
      %761 = vmatpush1.bf16.msra.mxu0 0
      %762 = vmatprep.subr.bf16.mxu0 0
      %763 = vmatpush1.bf16.msra.mxu0 0
      %764 = vmatprep.subr.bf16.mxu0 0
      %765 = vmatpush1.bf16.msra.mxu0 0
      %766 = vmatprep.subr.bf16.mxu0 0
      %767 = vmatpush1.bf16.msra.mxu0 0
      %768 = vmatprep.subr.bf16.mxu0 0
      %769 = vmatpush1.bf16.msra.mxu0 0
      %770 = vmatprep.subr.bf16.mxu0 0
      %771 = vmatpush1.bf16.msra.mxu0 0
      %772 = vmatprep.subr.bf16.mxu0 0
      %773 = vmatpush1.bf16.msra.mxu0 0
      %774 = vmatprep.subr.bf16.mxu0 0
      %775 = vmatpush1.bf16.msra.mxu0 0
      %776 = vmatprep.subr.bf16.mxu0 0
      %777 = vmatpush1.bf16.msra.mxu0 0
      %778 = vmatprep.subr.bf16.mxu0 0
      %779 = vmatpush1.bf16.msra.mxu0 0
      %780 = vmatprep.subr.bf16.mxu0 0
      %781 = vmatpush1.bf16.msra.mxu0 0
      %782 = vmatprep.subr.bf16.mxu0 0
      %783 = vmatpush1.bf16.msra.mxu0 0
      %784 = vmatprep.subr.bf16.mxu0 0
      %785 = vmatpush1.bf16.msra.mxu0 0
      %786 = vmatprep.subr.bf16.mxu0 0
      %787 = vmatpush1.bf16.msra.mxu0 0
      %788 = vmatprep.mubr.bf16.mxu0 0
      %789 = vmatmul.mubr.bf16.gmra.mrb[0].mxu0 %v754
      %v790 = vpop.f32.mrb[0].mxu0
      %v791 = vadd.f32 0.0, %v790
      %v792 = vpop.f32.mrb[0].mxu0
      %v793 = vpop.f32.mrb[0].mxu0
      %v794 = vpop.f32.mrb[0].mxu0
      %795 = vdwg.mxu0
      %v796 = vadd.f32 %v748, %v791
      %v797 = vxor.u32 %v796, 2147483648
      %v798 = vmul.f32 %v797, 1.442695
      %v799 = vpow.pop %v798
      %v800 = vadd.f32 %v799, 1.0
      %v801 = vrcp.pop %v800
      %v802 = vmul.f32 1.0, %v801
      %v803 = vtanh.pop %v796
      %v804 = vsel %vm497, %v803, %v802
      %v805 = vmul.f32 %v804, %v734
      %807 = vrot.lane.b32.xlu0 %v804, 64
      %v808 = vpop.permute.xlu0 %807
      %v810 = vmul.f32 %v804, %v808
      %812 = vrot.lane.b32.xlu0 %v810, 32
      %v813 = vpop.permute.xlu0 %812
      %v815 = vadd.f32 %v805, %v813
      %v816 = vtanh.pop %v815
      %818 = vrot.lane.b32.xlu0 %v816, 64
      %v819 = vpop.permute.xlu0 %818
      %v821 = vmul.f32 %v804, %v819
      %823 = vrot.lane.b32.xlu0 %v821, 32
      %v824 = vpop.permute.xlu0 %823
      %s826 = scalar_lea.vmem [#allocation2], 24
      %827 = vst.msk [vmem:[%s826] sm:$0xff] %vm403, %v824
      %s828 = scalar_lea.vmem [#allocation3], 32
      %v829 = vld [vmem:[%s828] sm:$0xff]
      %v830 = vpack.c.bf16 %v821, %v821
      %832 = vrot.lane.b32.xlu0 %v830, 32
      %v833 = vpop.permute.xlu0 %832
      %v835 = vsel %vm403, %v833, 0
      %837 = vmatprep.subr.bf16.mxu0 0
      %838 = vmatpush1.bf16.msra.mxu0 %v507
      %839 = vmatprep.subr.bf16.mxu0 0
      %840 = vmatpush1.bf16.msra.mxu0 %v508
      %841 = vmatprep.subr.bf16.mxu0 0
      %842 = vmatpush1.bf16.msra.mxu0 0
      %843 = vmatprep.subr.bf16.mxu0 0
      %844 = vmatpush1.bf16.msra.mxu0 0
      %845 = vmatprep.subr.bf16.mxu0 0
      %846 = vmatpush1.bf16.msra.mxu0 0
      %847 = vmatprep.subr.bf16.mxu0 0
      %848 = vmatpush1.bf16.msra.mxu0 0
      %849 = vmatprep.subr.bf16.mxu0 0
      %850 = vmatpush1.bf16.msra.mxu0 0
      %851 = vmatprep.subr.bf16.mxu0 0
      %852 = vmatpush1.bf16.msra.mxu0 0
      %853 = vmatprep.subr.bf16.mxu0 0
      %854 = vmatpush1.bf16.msra.mxu0 0
      %855 = vmatprep.subr.bf16.mxu0 0
      %856 = vmatpush1.bf16.msra.mxu0 0
      %857 = vmatprep.subr.bf16.mxu0 0
      %858 = vmatpush1.bf16.msra.mxu0 0
      %859 = vmatprep.subr.bf16.mxu0 0
      %860 = vmatpush1.bf16.msra.mxu0 0
      %861 = vmatprep.subr.bf16.mxu0 0
      %862 = vmatpush1.bf16.msra.mxu0 0
      %863 = vmatprep.subr.bf16.mxu0 0
      %864 = vmatpush1.bf16.msra.mxu0 0
      %865 = vmatprep.subr.bf16.mxu0 0
      %866 = vmatpush1.bf16.msra.mxu0 0
      %867 = vmatprep.subr.bf16.mxu0 0
      %868 = vmatpush1.bf16.msra.mxu0 0
      %869 = vmatprep.mubr.bf16.mxu0 0
      %870 = vmatmul.mubr.bf16.gmra.mrb[0].mxu0 %v835
      %v871 = vpop.f32.mrb[0].mxu0
      %v872 = vadd.f32 0.0, %v871
      %v873 = vpop.f32.mrb[0].mxu0
      %v874 = vpop.f32.mrb[0].mxu0
      %v875 = vpop.f32.mrb[0].mxu0
      %876 = vdwg.mxu0
      %v877 = vadd.f32 %v829, %v872
      %v878 = vxor.u32 %v877, 2147483648
      %v879 = vmul.f32 %v878, 1.442695
      %v880 = vpow.pop %v879
      %v881 = vadd.f32 %v880, 1.0
      %v882 = vrcp.pop %v881
      %v883 = vmul.f32 1.0, %v882
      %v884 = vtanh.pop %v877
      %v885 = vsel %vm497, %v884, %v883
      %v886 = vmul.f32 %v885, %v815
      %888 = vrot.lane.b32.xlu0 %v885, 64
      %v889 = vpop.permute.xlu0 %888
      %v891 = vmul.f32 %v885, %v889
      %893 = vrot.lane.b32.xlu0 %v891, 32
      %v894 = vpop.permute.xlu0 %893
      %v896 = vadd.f32 %v886, %v894
      %v897 = vtanh.pop %v896
      %899 = vrot.lane.b32.xlu0 %v897, 64
      %v900 = vpop.permute.xlu0 %899
      %v902 = vmul.f32 %v885, %v900
      %904 = vrot.lane.b32.xlu0 %v902, 32
      %v905 = vpop.permute.xlu0 %904
      %s907 = scalar_lea.vmem [#allocation2], 32
      %908 = vst.msk [vmem:[%s907] sm:$0xff] %vm403, %v905
      %s909 = scalar_lea.vmem [#allocation3], 40
      %v910 = vld [vmem:[%s909] sm:$0xff]
      %v911 = vpack.c.bf16 %v902, %v902
      %913 = vrot.lane.b32.xlu0 %v911, 32
      %v914 = vpop.permute.xlu0 %913
      %v916 = vsel %vm403, %v914, 0
      %918 = vmatprep.subr.bf16.mxu0 0
      %919 = vmatpush1.bf16.msra.mxu0 %v507
      %920 = vmatprep.subr.bf16.mxu0 0
      %921 = vmatpush1.bf16.msra.mxu0 %v508
      %922 = vmatprep.subr.bf16.mxu0 0
      %923 = vmatpush1.bf16.msra.mxu0 0
      %924 = vmatprep.subr.bf16.mxu0 0
      %925 = vmatpush1.bf16.msra.mxu0 0
      %926 = vmatprep.subr.bf16.mxu0 0
      %927 = vmatpush1.bf16.msra.mxu0 0
      %928 = vmatprep.subr.bf16.mxu0 0
      %929 = vmatpush1.bf16.msra.mxu0 0
      %930 = vmatprep.subr.bf16.mxu0 0
      %931 = vmatpush1.bf16.msra.mxu0 0
      %932 = vmatprep.subr.bf16.mxu0 0
      %933 = vmatpush1.bf16.msra.mxu0 0
      %934 = vmatprep.subr.bf16.mxu0 0
      %935 = vmatpush1.bf16.msra.mxu0 0
      %936 = vmatprep.subr.bf16.mxu0 0
      %937 = vmatpush1.bf16.msra.mxu0 0
      %938 = vmatprep.subr.bf16.mxu0 0
      %939 = vmatpush1.bf16.msra.mxu0 0
      %940 = vmatprep.subr.bf16.mxu0 0
      %941 = vmatpush1.bf16.msra.mxu0 0
      %942 = vmatprep.subr.bf16.mxu0 0
      %943 = vmatpush1.bf16.msra.mxu0 0
      %944 = vmatprep.subr.bf16.mxu0 0
      %945 = vmatpush1.bf16.msra.mxu0 0
      %946 = vmatprep.subr.bf16.mxu0 0
      %947 = vmatpush1.bf16.msra.mxu0 0
      %948 = vmatprep.subr.bf16.mxu0 0
      %949 = vmatpush1.bf16.msra.mxu0 0
      %950 = vmatprep.mubr.bf16.mxu0 0
      %951 = vmatmul.mubr.bf16.gmra.mrb[0].mxu0 %v916
      %v952 = vpop.f32.mrb[0].mxu0
      %v953 = vadd.f32 0.0, %v952
      %v954 = vpop.f32.mrb[0].mxu0
      %v955 = vpop.f32.mrb[0].mxu0
      %v956 = vpop.f32.mrb[0].mxu0
      %957 = vdwg.mxu0
      %v958 = vadd.f32 %v910, %v953
      %v959 = vxor.u32 %v958, 2147483648
      %v960 = vmul.f32 %v959, 1.442695
      %v961 = vpow.pop %v960
      %v962 = vadd.f32 %v961, 1.0
      %v963 = vrcp.pop %v962
      %v964 = vmul.f32 1.0, %v963
      %v965 = vtanh.pop %v958
      %v966 = vsel %vm497, %v965, %v964
      %v967 = vmul.f32 %v966, %v896
      %969 = vrot.lane.b32.xlu0 %v966, 64
      %v970 = vpop.permute.xlu0 %969
      %v972 = vmul.f32 %v966, %v970
      %974 = vrot.lane.b32.xlu0 %v972, 32
      %v975 = vpop.permute.xlu0 %974
      %v977 = vadd.f32 %v967, %v975
      %v978 = vtanh.pop %v977
      %980 = vrot.lane.b32.xlu0 %v978, 64
      %v981 = vpop.permute.xlu0 %980
      %v983 = vmul.f32 %v966, %v981
      %985 = vrot.lane.b32.xlu0 %v983, 32
      %v986 = vpop.permute.xlu0 %985
      %s988 = scalar_lea.vmem [#allocation2], 40
      %989 = vst.msk [vmem:[%s988] sm:$0xff] %vm403, %v986
      %s990 = scalar_lea.vmem [#allocation3], 48
      %v991 = vld [vmem:[%s990] sm:$0xff]
      %v992 = vpack.c.bf16 %v983, %v983
      %994 = vrot.lane.b32.xlu0 %v992, 32
      %v995 = vpop.permute.xlu0 %994
      %v997 = vsel %vm403, %v995, 0
      %999 = vmatprep.subr.bf16.mxu0 0
      %1000 = vmatpush1.bf16.msra.mxu0 %v507
      %1001 = vmatprep.subr.bf16.mxu0 0
      %1002 = vmatpush1.bf16.msra.mxu0 %v508
      %1003 = vmatprep.subr.bf16.mxu0 0
      %1004 = vmatpush1.bf16.msra.mxu0 0
      %1005 = vmatprep.subr.bf16.mxu0 0
      %1006 = vmatpush1.bf16.msra.mxu0 0
      %1007 = vmatprep.subr.bf16.mxu0 0
      %1008 = vmatpush1.bf16.msra.mxu0 0
      %1009 = vmatprep.subr.bf16.mxu0 0
      %1010 = vmatpush1.bf16.msra.mxu0 0
      %1011 = vmatprep.subr.bf16.mxu0 0
      %1012 = vmatpush1.bf16.msra.mxu0 0
      %1013 = vmatprep.subr.bf16.mxu0 0
      %1014 = vmatpush1.bf16.msra.mxu0 0
      %1015 = vmatprep.subr.bf16.mxu0 0
      %1016 = vmatpush1.bf16.msra.mxu0 0
      %1017 = vmatprep.subr.bf16.mxu0 0
      %1018 = vmatpush1.bf16.msra.mxu0 0
      %1019 = vmatprep.subr.bf16.mxu0 0
      %1020 = vmatpush1.bf16.msra.mxu0 0
      %1021 = vmatprep.subr.bf16.mxu0 0
      %1022 = vmatpush1.bf16.msra.mxu0 0
      %1023 = vmatprep.subr.bf16.mxu0 0
      %1024 = vmatpush1.bf16.msra.mxu0 0
      %1025 = vmatprep.subr.bf16.mxu0 0
      %1026 = vmatpush1.bf16.msra.mxu0 0
      %1027 = vmatprep.subr.bf16.mxu0 0
      %1028 = vmatpush1.bf16.msra.mxu0 0
      %1029 = vmatprep.subr.bf16.mxu0 0
      %1030 = vmatpush1.bf16.msra.mxu0 0
      %1031 = vmatprep.mubr.bf16.mxu0 0
      %1032 = vmatmul.mubr.bf16.gmra.mrb[0].mxu0 %v997
      %v1033 = vpop.f32.mrb[0].mxu0
      %v1034 = vadd.f32 0.0, %v1033
      %v1035 = vpop.f32.mrb[0].mxu0
      %v1036 = vpop.f32.mrb[0].mxu0
      %v1037 = vpop.f32.mrb[0].mxu0
      %1038 = vdwg.mxu0
      %v1039 = vadd.f32 %v991, %v1034
      %v1040 = vxor.u32 %v1039, 2147483648
      %v1041 = vmul.f32 %v1040, 1.442695
      %v1042 = vpow.pop %v1041
      %v1043 = vadd.f32 %v1042, 1.0
      %v1044 = vrcp.pop %v1043
      %v1045 = vmul.f32 1.0, %v1044
      %v1046 = vtanh.pop %v1039
      %v1047 = vsel %vm497, %v1046, %v1045
      %v1048 = vmul.f32 %v1047, %v977
      %1050 = vrot.lane.b32.xlu0 %v1047, 64
      %v1051 = vpop.permute.xlu0 %1050
      %v1053 = vmul.f32 %v1047, %v1051
      %1055 = vrot.lane.b32.xlu0 %v1053, 32
      %v1056 = vpop.permute.xlu0 %1055
      %v1058 = vadd.f32 %v1048, %v1056
      %v1059 = vtanh.pop %v1058
      %1061 = vrot.lane.b32.xlu0 %v1059, 64
      %v1062 = vpop.permute.xlu0 %1061
      %v1064 = vmul.f32 %v1047, %v1062
      %1066 = vrot.lane.b32.xlu0 %v1064, 32
      %v1067 = vpop.permute.xlu0 %1066
      %s1069 = scalar_lea.vmem [#allocation2], 48
      %1070 = vst.msk [vmem:[%s1069] sm:$0xff] %vm403, %v1067
      %s1071 = scalar_lea.vmem [#allocation3], 56
      %v1072 = vld [vmem:[%s1071] sm:$0xff]
      %v1073 = vpack.c.bf16 %v1064, %v1064
      %1075 = vrot.lane.b32.xlu0 %v1073, 32
      %v1076 = vpop.permute.xlu0 %1075
      %v1078 = vsel %vm403, %v1076, 0
      %1080 = vmatprep.subr.bf16.mxu0 0
      %1081 = vmatpush1.bf16.msra.mxu0 %v507
      %1082 = vmatprep.subr.bf16.mxu0 0
      %1083 = vmatpush1.bf16.msra.mxu0 %v508
      %1084 = vmatprep.subr.bf16.mxu0 0
      %1085 = vmatpush1.bf16.msra.mxu0 0
      %1086 = vmatprep.subr.bf16.mxu0 0
      %1087 = vmatpush1.bf16.msra.mxu0 0
      %1088 = vmatprep.subr.bf16.mxu0 0
      %1089 = vmatpush1.bf16.msra.mxu0 0
      %1090 = vmatprep.subr.bf16.mxu0 0
      %1091 = vmatpush1.bf16.msra.mxu0 0
      %1092 = vmatprep.subr.bf16.mxu0 0
      %1093 = vmatpush1.bf16.msra.mxu0 0
      %1094 = vmatprep.subr.bf16.mxu0 0
      %1095 = vmatpush1.bf16.msra.mxu0 0
      %1096 = vmatprep.subr.bf16.mxu0 0
      %1097 = vmatpush1.bf16.msra.mxu0 0
      %1098 = vmatprep.subr.bf16.mxu0 0
      %1099 = vmatpush1.bf16.msra.mxu0 0
      %1100 = vmatprep.subr.bf16.mxu0 0
      %1101 = vmatpush1.bf16.msra.mxu0 0
      %1102 = vmatprep.subr.bf16.mxu0 0
      %1103 = vmatpush1.bf16.msra.mxu0 0
      %1104 = vmatprep.subr.bf16.mxu0 0
      %1105 = vmatpush1.bf16.msra.mxu0 0
      %1106 = vmatprep.subr.bf16.mxu0 0
      %1107 = vmatpush1.bf16.msra.mxu0 0
      %1108 = vmatprep.subr.bf16.mxu0 0
      %1109 = vmatpush1.bf16.msra.mxu0 0
      %1110 = vmatprep.subr.bf16.mxu0 0
      %1111 = vmatpush1.bf16.msra.mxu0 0
      %1112 = vmatprep.mubr.bf16.mxu0 0
      %1113 = vmatmul.mubr.bf16.gmra.mrb[0].mxu0 %v1078
      %v1114 = vpop.f32.mrb[0].mxu0
      %v1115 = vadd.f32 0.0, %v1114
      %v1116 = vpop.f32.mrb[0].mxu0
      %v1117 = vpop.f32.mrb[0].mxu0
      %v1118 = vpop.f32.mrb[0].mxu0
      %1119 = vdwg.mxu0
      %v1120 = vadd.f32 %v1072, %v1115
      %v1121 = vxor.u32 %v1120, 2147483648
      %v1122 = vmul.f32 %v1121, 1.442695
      %v1123 = vpow.pop %v1122
      %v1124 = vadd.f32 %v1123, 1.0
      %v1125 = vrcp.pop %v1124
      %v1126 = vmul.f32 1.0, %v1125
      %v1127 = vtanh.pop %v1120
      %v1128 = vsel %vm497, %v1127, %v1126
      %v1129 = vmul.f32 %v1128, %v1058
      %1131 = vrot.lane.b32.xlu0 %v1128, 64
      %v1132 = vpop.permute.xlu0 %1131
      %v1134 = vmul.f32 %v1128, %v1132
      %1136 = vrot.lane.b32.xlu0 %v1134, 32
      %v1137 = vpop.permute.xlu0 %1136
      %v1139 = vadd.f32 %v1129, %v1137
      %v1140 = vtanh.pop %v1139
      %1142 = vrot.lane.b32.xlu0 %v1140, 64
      %v1143 = vpop.permute.xlu0 %1142
      %v1145 = vmul.f32 %v1128, %v1143
      %1147 = vrot.lane.b32.xlu0 %v1145, 32
      %v1148 = vpop.permute.xlu0 %1147
      %s1150 = scalar_lea.vmem [#allocation2], 56
      %1151 = vst.msk [vmem:[%s1150] sm:$0xff] %vm403, %v1148
      %p1152 = scmp.eq.s32.totalorder %s24, 1
      // Predicated region
      $region116: #{lstm_model_forward.1} parent=39 // pred_check
        %p1153 = pneg %p1152
      $region117: #{lstm_model_forward.1} parent=39 // pred_check_branch
        %1155 = sbr.rel (%p1153) target = $region119
      $region118: #{lstm_model_forward.1} parent=39 // pred_region
        %v1156 = vpack.c.bf16 %v1145, %v1145
        %v1157 = vld [vmem:[%s5] sm:$0xf]
        %v1158 = vld [vmem:[%s5 + $0x4] sm:$0xf]
        %v1159 = vld [vmem:[%s5 + $0x8] sm:$0xf]
        %v1160 = vld [vmem:[%s5 + $0xc] sm:$0xf]
        %v1161 = vld [vmem:[%s6] sm:$0x1]
        %v1163 = vlaneseq
        %v1164 = vshrl.u32 %v1163, 7
        %v1165 = vsub.s32 0, %v1164
        %v1166 = vrot.slane %v1161, %v1165
        %1169 = vrot.lane.b32.xlu0 %v1156, 32
        %v1170 = vpop.permute.xlu0 %1169
        %v1175 = vunpack.c.l.b16 %v1157
        %v1176 = vunpack.c.l.b16 %v1158
        %v1177 = vunpack.c.l.b16 %v1159
        %v1178 = vunpack.c.l.b16 %v1160
        %v1179 = vpack.c.b16 %v1176, %v1175
        %v1180 = vpack.c.b16 %v1178, %v1177
        %v1184 = vsel %vm403, %v1170, 0
        %1186 = vmatprep.subr.bf16.mxu0 0
        %1187 = vmatpush1.bf16.msra.mxu0 %v1179
        %1188 = vmatprep.subr.bf16.mxu0 0
        %1189 = vmatpush1.bf16.msra.mxu0 %v1180
        %1190 = vmatprep.subr.bf16.mxu0 0
        %1191 = vmatpush1.bf16.msra.mxu0 0
        %1192 = vmatprep.subr.bf16.mxu0 0
        %1193 = vmatpush1.bf16.msra.mxu0 0
        %1194 = vmatprep.subr.bf16.mxu0 0
        %1195 = vmatpush1.bf16.msra.mxu0 0
        %1196 = vmatprep.subr.bf16.mxu0 0
        %1197 = vmatpush1.bf16.msra.mxu0 0
        %1198 = vmatprep.subr.bf16.mxu0 0
        %1199 = vmatpush1.bf16.msra.mxu0 0
        %1200 = vmatprep.subr.bf16.mxu0 0
        %1201 = vmatpush1.bf16.msra.mxu0 0
        %1202 = vmatprep.subr.bf16.mxu0 0
        %1203 = vmatpush1.bf16.msra.mxu0 0
        %1204 = vmatprep.subr.bf16.mxu0 0
        %1205 = vmatpush1.bf16.msra.mxu0 0
        %1206 = vmatprep.subr.bf16.mxu0 0
        %1207 = vmatpush1.bf16.msra.mxu0 0
        %1208 = vmatprep.subr.bf16.mxu0 0
        %1209 = vmatpush1.bf16.msra.mxu0 0
        %1210 = vmatprep.subr.bf16.mxu0 0
        %1211 = vmatpush1.bf16.msra.mxu0 0
        %1212 = vmatprep.subr.bf16.mxu0 0
        %1213 = vmatpush1.bf16.msra.mxu0 0
        %1214 = vmatprep.subr.bf16.mxu0 0
        %1215 = vmatpush1.bf16.msra.mxu0 0
        %1216 = vmatprep.subr.bf16.mxu0 0
        %1217 = vmatpush1.bf16.msra.mxu0 0
        %1218 = vmatprep.mubr.bf16.mxu0 0
        %1219 = vmatmul.mubr.bf16.gmra.mrb[0].mxu0 %v1184
        %v1220 = vpop.f32.mrb[0].mxu0
        %v1221 = vadd.f32 %v1166, %v1220
        %v1222 = vpop.f32.mrb[0].mxu0
        %v1223 = vpop.f32.mrb[0].mxu0
        %v1224 = vpop.f32.mrb[0].mxu0
        %1225 = vdwg.mxu0
        %1226 = vst [vmem:[%s7] sm:$0xff] %v1221
      $region119: #{lstm_model_forward.1} parent=39 // pred_fallthru
        _
      // Predicated region
      $region120: #{lstm_model_forward.1} parent=39 // pred_check
        %p1227 = pneg %p157
      $region121: #{lstm_model_forward.1} parent=39 // pred_check_branch
        %1229 = sbr.rel (%p1227) target = $region123
      $region122: #{lstm_model_forward.1} parent=39 // pred_region
        _
      $region123: #{lstm_model_forward.1} parent=39 // pred_fallthru
        _
      // Predicated region
      $region124: #{lstm_model_forward.1} parent=39 // pred_check
        %p1230 = pneg %p157
      $region125: #{lstm_model_forward.1} parent=39 // pred_check_branch
        %1232 = sbr.rel (%p1230) target = $region127
      $region126: #{lstm_model_forward.1} parent=39 // pred_region
        _
      $region127: #{lstm_model_forward.1} parent=39 // pred_fallthru
        _
    $region40: #{lstm_model_forward.1} parent=5 // pred_fallthru
      _
    %p1233 = scmp.le.s32.totalorder 2, %s19
    // Predicated region
    $region128: #{lstm_model_forward.1} parent=5 // pred_check
      %p1234 = pneg %p1233
    $region129: #{lstm_model_forward.1} parent=5 // pred_check_branch
      %1236 = sbr.rel (%p1234) target = $region131
    $region130: #{lstm_model_forward.1} parent=5 // pred_region
      %s1237 = ssub.s32 %s19, 2
    $region131: #{lstm_model_forward.1} parent=5 // pred_fallthru
      _
  $region6: #{lstm_model_forward.1} parent=0 // loop_footer
    %s23 = sadd.s32 1, %s19
  $region7: #{lstm_model_forward.1} parent=0 // loop_footer_branch
    %18 = sbr.rel target = $region3
  $region8: #{lstm_model_forward.1} parent=0 // loop_exit
    _
  %1238 = vsyncmov [#allocation4]
  %s1239 = vpop.sfrf %1238
  %p1240 = scmp.eq.s32.totalorder %s1239, 0
  %p1241 = pneg %p1240
  %1243 = shalt.err (%p1241)
  %s1244 = scalar_lea.sflag [#allocation4], 1
  %1245 = vsyncmov %s1244
  %s1246 = vpop.sfrf %1245
  %p1247 = scmp.eq.s32.totalorder %s1246, 0
  %p1248 = pneg %p1247
  %1250 = shalt.err (%p1248)

</llo_original>
